<compile_context>
chip_gen: v6e
topology: v6e:2x2x1
jax: 0.10.0
libtpu: 0.0.40
codegen_flags: <defaults>
</compile_context>

<pallas_src>
import functools

import jax
import jax.numpy as jnp
from jax import lax
from jax.experimental import pallas as pl
from jax.experimental.pallas import tpu as pltpu


def _sigmoid(x):
    # sigmoid(x) = 0.5*(tanh(0.5x)+1): tanh runs on the EUP slot (otherwise
    # idle here) instead of paying for exp + divide on the VPU path.
    return 0.5 * (jnp.tanh(0.5 * x) + 1.0)


def _gru_gates(gx, gh, h, H):
    """PyTorch GRU cell update from pre-activation gate rows (all f32)."""
    r = _sigmoid(gx[:, 0:H] + gh[:, 0:H])
    z = _sigmoid(gx[:, H:2 * H] + gh[:, H:2 * H])
    n = jnp.tanh(gx[:, 2 * H:3 * H] + r * gh[:, 2 * H:3 * H])
    return (1.0 - z) * n + z * h


def _encoder_gru_kernel(tok_ref,     # scalar prefetch (SMEM): (S,) int32 token ids
                        gx_ref,      # (V, 1, 3H) f32  folded emb@W_ih^T + b_ih table
                        h0_ref,      # (1, H)     f32  initial hidden
                        w_ref,       # (H, 6H)    bf16 [W_ih^T | W_hh^T]
                        b_ref,       # (1, 6H)    f32  [b_ih   | b_hh ]
                        out_ref,     # (S, 1, H)  f32  per-step output (== hidden)
                        *, hidden_size, n_layers, seq_len, unroll):
    H = hidden_size

    def extra_layer(_, h):
        # Shared-weight re-application: for a 1-step GRU output == new hidden,
        # so input == hidden and both matmuls fuse into one (1,H)@(H,6H).
        g = jnp.dot(h.astype(jnp.bfloat16), w_ref[...],
                    preferred_element_type=jnp.float32) + b_ref[...]
        return _gru_gates(g[:, 0:3 * H], g[:, 3 * H:6 * H], h, H)

    def step(s, h):
        # Layer 0 input projection is a pure (f32-exact) table lookup: the
        # embedded token only ever feeds W_ih, folded at prep time.
        gx = gx_ref[tok_ref[s]]                                     # (1, 3H)
        gh = jnp.dot(h.astype(jnp.bfloat16), w_ref[:, 3 * H:6 * H],
                     preferred_element_type=jnp.float32) + b_ref[:, 3 * H:6 * H]
        h = _gru_gates(gx, gh, h, H)
        if n_layers > 1:
            h = lax.fori_loop(1, n_layers, extra_layer, h, unroll=True)
        out_ref[s] = h          # VMEM write; whole block hits HBM once at the end
        return h

    # Whole sequence inside one invocation; hidden state is the loop carry.
    lax.fori_loop(0, seq_len, step, h0_ref[...], unroll=unroll)


def prepare_params(params):
    """One-time parameter prep (hoisted out of the hot path)."""
    emb = params["embedding"].astype(jnp.float32)              # (V, H)
    V, H = emb.shape
    assert H % 128 == 0, "hidden_size must be a multiple of 128 (lane alignment)"
    w_ih_t = params["w_ih"].astype(jnp.float32).T              # (H, 3H)
    w_hh_t = params["w_hh"].astype(jnp.float32).T              # (H, 3H)
    b_ih = params["b_ih"].astype(jnp.float32)
    b_hh = params["b_hh"].astype(jnp.float32)
    # Fold embedding ∘ W_ih (+ b_ih) into one f32 lookup table; (V,1,3H) so the
    # kernel can gather a row with a dynamic leading-axis index.
    gx_table = (jnp.dot(emb, w_ih_t, precision=jax.lax.Precision.HIGHEST)
                + b_ih[None, :]).reshape(V, 1, 3 * H)
    w_cat = jnp.concatenate([w_ih_t, w_hh_t], axis=1).astype(jnp.bfloat16)  # (H, 6H)
    b_cat = jnp.concatenate([b_ih, b_hh]).reshape(1, 6 * H).astype(jnp.float32)
    return {"gx_table": gx_table, "w_cat": w_cat, "b_cat": b_cat,
            "vocab": V, "hidden": H}


def encoder_rnn_forward(tokens, hidden, prep, *, n_layers=1):
    """tokens: (S,) or (S,1) int token ids (one PyTorch forward call per token,
    hidden threaded through).  hidden: (1,1,H) f32.
    Returns (output, hidden): output is (S,1,H) — for S==1 this is exactly the
    (1,1,H) output of the PyTorch module — and hidden is the final (1,1,H)."""
    V, H = prep["vocab"], prep["hidden"]
    # NOTE: PyTorch would raise on out-of-range ids; we clip for in-kernel safety.
    tokens = jnp.clip(tokens.reshape(-1).astype(jnp.int32), 0, V - 1)
    S = int(tokens.shape[0])
    h0 = hidden.reshape(1, H).astype(jnp.float32)

    kernel = functools.partial(_encoder_gru_kernel, hidden_size=H,
                               n_layers=n_layers, seq_len=S, unroll=(S <= 16))

    # Tight-but-safe VMEM budget (footprint here ~2 MiB with double buffering);
    # fits easily on v5e/v6e/v7x.
    table_vmem = V * 8 * (3 * H) * 4          # sublane-padded (V,1,3H) f32
    vmem_limit = min(2 * table_vmem + (4 << 20), 64 << 20)

    # TODO(synk): a single-sequence recurrence cannot use v7x's second
    # TensorCore; a batched workload should add a leading "parallel" grid axis.
    out = pl.pallas_call(
        kernel,
        out_shape=jax.ShapeDtypeStruct((S, 1, H), jnp.float32),
        grid_spec=pltpu.PrefetchScalarGridSpec(
            num_scalar_prefetch=1,
            grid=(1,),                      # single invocation: no per-token grid overhead
            in_specs=[
                pl.BlockSpec((V, 1, 3 * H), lambda i, tok: (0, 0, 0)),  # gx table, resident
                pl.BlockSpec((1, H), lambda i, tok: (0, 0)),            # h0
                pl.BlockSpec((H, 6 * H), lambda i, tok: (0, 0)),        # weights, resident
                pl.BlockSpec((1, 6 * H), lambda i, tok: (0, 0)),        # biases, resident
            ],
            out_specs=pl.BlockSpec((S, 1, H), lambda i, tok: (0, 0, 0)),  # one writeback
        ),
        compiler_params=pltpu.CompilerParams(
            dimension_semantics=("arbitrary",),
            vmem_limit_bytes=int(vmem_limit),
        ),
    )(tokens, prep["gx_table"], h0, prep["w_cat"], prep["b_cat"])

    final_hidden = out[S - 1:S]            # (1,1,H); output == hidden for a 1-step GRU
    return out, final_hidden


def _ref_forward(tokens, hidden, params, n_layers=1):
    """Pure-JAX reference of the PyTorch forward (raw f32 params; the recurrent
    matmuls use the same bf16 weight cast as the kernel's MXU path)."""
    emb = params["embedding"].astype(jnp.float32)
    V, H = emb.shape
    w_ih_t = params["w_ih"].astype(jnp.float32).T
    w_hh_t = params["w_hh"].astype(jnp.float32).T
    b_ih = params["b_ih"].astype(jnp.float32)[None, :]
    b_hh = params["b_hh"].astype(jnp.float32)[None, :]
    w_ih_bf = w_ih_t.astype(jnp.bfloat16)
    w_hh_bf = w_hh_t.astype(jnp.bfloat16)

    tokens = jnp.clip(tokens.reshape(-1).astype(jnp.int32), 0, V - 1)
    h = hidden.reshape(1, H).astype(jnp.float32)
    outs = []
    for t in range(int(tokens.shape[0])):
        x = emb[tokens[t]].reshape(1, H)
        gx = jnp.dot(x, w_ih_t, precision=jax.lax.Precision.HIGHEST) + b_ih
        gh = jnp.dot(h.astype(jnp.bfloat16), w_hh_bf,
                     preferred_element_type=jnp.float32) + b_hh
        h = _gru_gates(gx, gh, h, H)
        for _ in range(n_layers - 1):
            gih = jnp.dot(h.astype(jnp.bfloat16), w_ih_bf,
                          preferred_element_type=jnp.float32) + b_ih
            ghh = jnp.dot(h.astype(jnp.bfloat16), w_hh_bf,
                          preferred_element_type=jnp.float32) + b_hh
            h = _gru_gates(gih, ghh, h, H)
        outs.append(h)
    out = jnp.stack(outs, axis=0)          # (S, 1, H)
    return out, h.reshape(1, 1, H)


if __name__ == "__main__":
    vocab_size = 64      # input_size
    hidden_size = 128    # lane-aligned so gate slices are whole vregs
    seq_len = 8

    key = jax.random.PRNGKey(0)
    k_emb, k_wih, k_whh, k_bih, k_bhh, k_tok = jax.random.split(key, 6)
    bound = 1.0 / float(jnp.sqrt(hidden_size))

    params = {
        # nn.Embedding default init ~ N(0, 1)
        "embedding": jax.random.normal(k_emb, (vocab_size, hidden_size), jnp.float32),
        # nn.GRU default init ~ U(-1/sqrt(H), 1/sqrt(H)); PyTorch layout (3H, H)
        "w_ih": jax.random.uniform(k_wih, (3 * hidden_size, hidden_size),
                                   jnp.float32, -bound, bound),
        "w_hh": jax.random.uniform(k_whh, (3 * hidden_size, hidden_size),
                                   jnp.float32, -bound, bound),
        "b_ih": jax.random.uniform(k_bih, (3 * hidden_size,),
                                   jnp.float32, -bound, bound),
        "b_hh": jax.random.uniform(k_bhh, (3 * hidden_size,),
                                   jnp.float32, -bound, bound),
    }
    prep = prepare_params(params)

    tokens = jax.random.randint(k_tok, (seq_len,), 0, vocab_size, dtype=jnp.int32)
    hidden0 = jnp.zeros((1, 1, hidden_size), jnp.float32)   # init_hidden()

    # n_layers = 1 (module default): whole sequence in one pallas_call.
    out, hid = encoder_rnn_forward(tokens, hidden0, prep, n_layers=1)
    out = jax.block_until_ready(out)
    hid = jax.block_until_ready(hid)
    ref_out, ref_hid = _ref_forward(tokens, hidden0, params, n_layers=1)
    assert out.shape == (seq_len, 1, hidden_size)
    assert hid.shape == (1, 1, hidden_size)
    assert jnp.allclose(out, ref_out, atol=5e-3, rtol=5e-3), "output mismatch (n_layers=1)"
    assert jnp.allclose(hid, ref_hid, atol=5e-3, rtol=5e-3), "hidden mismatch (n_layers=1)"

    # n_layers = 2: exercises the fused (1,H)@(H,6H) shared-weight re-application.
    out2, hid2 = encoder_rnn_forward(tokens, hidden0, prep, n_layers=2)
    out2 = jax.block_until_ready(out2)
    hid2 = jax.block_until_ready(hid2)
    ref_out2, ref_hid2 = _ref_forward(tokens, hidden0, params, n_layers=2)
    assert jnp.allclose(out2, ref_out2, atol=5e-3, rtol=5e-3), "output mismatch (n_layers=2)"
    assert jnp.allclose(hid2, ref_hid2, atol=5e-3, rtol=5e-3), "hidden mismatch (n_layers=2)"

    print("KERNEL_OK")
</pallas_src>

<mosaic_0001>
module attributes {stable_mosaic.version = 11 : i64} {
  func.func @_encoder_gru_kernel(%arg0: i32, %arg1: memref<8xi32, #tpu.memory_space<smem>>, %arg2: memref<64x1x384xf32, #tpu.memory_space<vmem>>, %arg3: memref<1x128xf32, #tpu.memory_space<vmem>>, %arg4: memref<128x768xbf16, #tpu.memory_space<vmem>>, %arg5: memref<1x768xf32, #tpu.memory_space<vmem>>, %arg6: memref<8x1x128xf32, #tpu.memory_space<vmem>>) attributes {dimension_semantics = [#tpu.dimension_semantics<arbitrary>], iteration_bounds = array<i64: 1>, scalar_prefetch = 1 : i64, scratch_operands = 0 : i64, tpu.core_type = #tpu.core_type<tc>, window_params = [{pipeline_mode = #tpu.pipeline_mode<synchronous>, transform_indices = @transform_0, window_bounds = array<i64: 64, 1, 384>}, {pipeline_mode = #tpu.pipeline_mode<synchronous>, transform_indices = @transform_1, window_bounds = array<i64: 1, 128>}, {pipeline_mode = #tpu.pipeline_mode<synchronous>, transform_indices = @transform_2, window_bounds = array<i64: 128, 768>}, {pipeline_mode = #tpu.pipeline_mode<synchronous>, transform_indices = @transform_3, window_bounds = array<i64: 1, 768>}, {pipeline_mode = #tpu.pipeline_mode<synchronous>, transform_indices = @transform_4, window_bounds = array<i64: 8, 1, 128>}]} {
    %c0 = arith.constant 0 : index
    %c0_0 = arith.constant 0 : index
    %0 = vector.load %arg3[%c0, %c0_0] : memref<1x128xf32, #tpu.memory_space<vmem>>, vector<1x128xf32>
    %c0_i32 = arith.constant 0 : i32
    %1 = arith.index_cast %c0_i32 : i32 to index
    %2 = memref.load %arg1[%1] : memref<8xi32, #tpu.memory_space<smem>>
    %3 = arith.index_cast %2 : i32 to index
    %c0_1 = arith.constant 0 : index
    %c0_2 = arith.constant 0 : index
    %4 = vector.load %arg2[%3, %c0_1, %c0_2] : memref<64x1x384xf32, #tpu.memory_space<vmem>>, vector<1x1x384xf32>
    %5 = vector.shape_cast %4 : vector<1x1x384xf32> to vector<1x384xf32>
    %6 = arith.truncf %0 : vector<1x128xf32> to vector<1x128xbf16>
    %c0_3 = arith.constant 0 : index
    %c384 = arith.constant 384 : index
    %7 = vector.load %arg4[%c0_3, %c384] : memref<128x768xbf16, #tpu.memory_space<vmem>>, vector<128x384xbf16>
    %cst = arith.constant dense<0.000000e+00> : vector<1x384xf32>
    %8 = tpu.matmul %6, %7, %cst {dimension_numbers = #tpu.dot_dimension_numbers<[1], [0], [0], [1], [0, 0, 1, 1], [], []>} : vector<1x128xbf16>, vector<128x384xbf16>, vector<1x384xf32> -> vector<1x384xf32>
    %c0_4 = arith.constant 0 : index
    %c384_5 = arith.constant 384 : index
    %9 = vector.load %arg5[%c0_4, %c384_5] : memref<1x768xf32, #tpu.memory_space<vmem>>, vector<1x384xf32>
    %10 = arith.addf %8, %9 : vector<1x384xf32>
    %11 = vector.extract_strided_slice %5 {offsets = [0, 0], sizes = [1, 128], strides = [1, 1]} : vector<1x384xf32> to vector<1x128xf32>
    %12 = vector.extract_strided_slice %10 {offsets = [0, 0], sizes = [1, 128], strides = [1, 1]} : vector<1x384xf32> to vector<1x128xf32>
    %13 = arith.addf %11, %12 : vector<1x128xf32>
    %cst_6 = arith.constant 5.000000e-01 : f32
    %14 = vector.broadcast %cst_6 : f32 to vector<1x128xf32>
    %15 = arith.mulf %14, %13 : vector<1x128xf32>
    %16 = math.tanh %15 : vector<1x128xf32>
    %cst_7 = arith.constant 1.000000e+00 : f32
    %17 = vector.broadcast %cst_7 : f32 to vector<1x128xf32>
    %18 = arith.addf %16, %17 : vector<1x128xf32>
    %cst_8 = arith.constant 5.000000e-01 : f32
    %19 = vector.broadcast %cst_8 : f32 to vector<1x128xf32>
    %20 = arith.mulf %19, %18 : vector<1x128xf32>
    %21 = vector.extract_strided_slice %5 {offsets = [0, 128], sizes = [1, 128], strides = [1, 1]} : vector<1x384xf32> to vector<1x128xf32>
    %22 = vector.extract_strided_slice %10 {offsets = [0, 128], sizes = [1, 128], strides = [1, 1]} : vector<1x384xf32> to vector<1x128xf32>
    %23 = arith.addf %21, %22 : vector<1x128xf32>
    %cst_9 = arith.constant 5.000000e-01 : f32
    %24 = vector.broadcast %cst_9 : f32 to vector<1x128xf32>
    %25 = arith.mulf %24, %23 : vector<1x128xf32>
    %26 = math.tanh %25 : vector<1x128xf32>
    %cst_10 = arith.constant 1.000000e+00 : f32
    %27 = vector.broadcast %cst_10 : f32 to vector<1x128xf32>
    %28 = arith.addf %26, %27 : vector<1x128xf32>
    %cst_11 = arith.constant 5.000000e-01 : f32
    %29 = vector.broadcast %cst_11 : f32 to vector<1x128xf32>
    %30 = arith.mulf %29, %28 : vector<1x128xf32>
    %31 = vector.extract_strided_slice %5 {offsets = [0, 256], sizes = [1, 128], strides = [1, 1]} : vector<1x384xf32> to vector<1x128xf32>
    %32 = vector.extract_strided_slice %10 {offsets = [0, 256], sizes = [1, 128], strides = [1, 1]} : vector<1x384xf32> to vector<1x128xf32>
    %33 = arith.mulf %20, %32 : vector<1x128xf32>
    %34 = arith.addf %31, %33 : vector<1x128xf32>
    %35 = math.tanh %34 : vector<1x128xf32>
    %cst_12 = arith.constant 1.000000e+00 : f32
    %36 = vector.broadcast %cst_12 : f32 to vector<1x128xf32>
    %37 = arith.subf %36, %30 : vector<1x128xf32>
    %38 = arith.mulf %37, %35 : vector<1x128xf32>
    %39 = arith.mulf %30, %0 : vector<1x128xf32>
    %40 = arith.addf %38, %39 : vector<1x128xf32>
    %41 = arith.index_cast %c0_i32 : i32 to index
    %c0_13 = arith.constant 0 : index
    %c0_14 = arith.constant 0 : index
    %42 = vector.load %arg6[%41, %c0_13, %c0_14] : memref<8x1x128xf32, #tpu.memory_space<vmem>>, vector<1x1x128xf32>
    %43 = vector.shape_cast %42 : vector<1x1x128xf32> to vector<1x128xf32>
    %44 = vector.shape_cast %40 : vector<1x128xf32> to vector<1x1x128xf32>
    tpu.vector_store %arg6[%41, %c0_13, %c0_14], %44 {strides = array<i32>} : memref<8x1x128xf32, #tpu.memory_space<vmem>>, vector<1x1x128xf32>,
    %c1_i32 = arith.constant 1 : i32
    %45 = arith.index_cast %c1_i32 : i32 to index
    %46 = memref.load %arg1[%45] : memref<8xi32, #tpu.memory_space<smem>>
    %47 = arith.index_cast %46 : i32 to index
    %c0_15 = arith.constant 0 : index
    %c0_16 = arith.constant 0 : index
    %48 = vector.load %arg2[%47, %c0_15, %c0_16] : memref<64x1x384xf32, #tpu.memory_space<vmem>>, vector<1x1x384xf32>
    %49 = vector.shape_cast %48 : vector<1x1x384xf32> to vector<1x384xf32>
    %50 = arith.truncf %40 : vector<1x128xf32> to vector<1x128xbf16>
    %c0_17 = arith.constant 0 : index
    %c384_18 = arith.constant 384 : index
    %51 = vector.load %arg4[%c0_17, %c384_18] : memref<128x768xbf16, #tpu.memory_space<vmem>>, vector<128x384xbf16>
    %cst_19 = arith.constant dense<0.000000e+00> : vector<1x384xf32>
    %52 = tpu.matmul %50, %51, %cst_19 {dimension_numbers = #tpu.dot_dimension_numbers<[1], [0], [0], [1], [0, 0, 1, 1], [], []>} : vector<1x128xbf16>, vector<128x384xbf16>, vector<1x384xf32> -> vector<1x384xf32>
    %c0_20 = arith.constant 0 : index
    %c384_21 = arith.constant 384 : index
    %53 = vector.load %arg5[%c0_20, %c384_21] : memref<1x768xf32, #tpu.memory_space<vmem>>, vector<1x384xf32>
    %54 = arith.addf %52, %53 : vector<1x384xf32>
    %55 = vector.extract_strided_slice %49 {offsets = [0, 0], sizes = [1, 128], strides = [1, 1]} : vector<1x384xf32> to vector<1x128xf32>
    %56 = vector.extract_strided_slice %54 {offsets = [0, 0], sizes = [1, 128], strides = [1, 1]} : vector<1x384xf32> to vector<1x128xf32>
    %57 = arith.addf %55, %56 : vector<1x128xf32>
    %cst_22 = arith.constant 5.000000e-01 : f32
    %58 = vector.broadcast %cst_22 : f32 to vector<1x128xf32>
    %59 = arith.mulf %58, %57 : vector<1x128xf32>
    %60 = math.tanh %59 : vector<1x128xf32>
    %cst_23 = arith.constant 1.000000e+00 : f32
    %61 = vector.broadcast %cst_23 : f32 to vector<1x128xf32>
    %62 = arith.addf %60, %61 : vector<1x128xf32>
    %cst_24 = arith.constant 5.000000e-01 : f32
    %63 = vector.broadcast %cst_24 : f32 to vector<1x128xf32>
    %64 = arith.mulf %63, %62 : vector<1x128xf32>
    %65 = vector.extract_strided_slice %49 {offsets = [0, 128], sizes = [1, 128], strides = [1, 1]} : vector<1x384xf32> to vector<1x128xf32>
    %66 = vector.extract_strided_slice %54 {offsets = [0, 128], sizes = [1, 128], strides = [1, 1]} : vector<1x384xf32> to vector<1x128xf32>
    %67 = arith.addf %65, %66 : vector<1x128xf32>
    %cst_25 = arith.constant 5.000000e-01 : f32
    %68 = vector.broadcast %cst_25 : f32 to vector<1x128xf32>
    %69 = arith.mulf %68, %67 : vector<1x128xf32>
    %70 = math.tanh %69 : vector<1x128xf32>
    %cst_26 = arith.constant 1.000000e+00 : f32
    %71 = vector.broadcast %cst_26 : f32 to vector<1x128xf32>
    %72 = arith.addf %70, %71 : vector<1x128xf32>
    %cst_27 = arith.constant 5.000000e-01 : f32
    %73 = vector.broadcast %cst_27 : f32 to vector<1x128xf32>
    %74 = arith.mulf %73, %72 : vector<1x128xf32>
    %75 = vector.extract_strided_slice %49 {offsets = [0, 256], sizes = [1, 128], strides = [1, 1]} : vector<1x384xf32> to vector<1x128xf32>
    %76 = vector.extract_strided_slice %54 {offsets = [0, 256], sizes = [1, 128], strides = [1, 1]} : vector<1x384xf32> to vector<1x128xf32>
    %77 = arith.mulf %64, %76 : vector<1x128xf32>
    %78 = arith.addf %75, %77 : vector<1x128xf32>
    %79 = math.tanh %78 : vector<1x128xf32>
    %cst_28 = arith.constant 1.000000e+00 : f32
    %80 = vector.broadcast %cst_28 : f32 to vector<1x128xf32>
    %81 = arith.subf %80, %74 : vector<1x128xf32>
    %82 = arith.mulf %81, %79 : vector<1x128xf32>
    %83 = arith.mulf %74, %40 : vector<1x128xf32>
    %84 = arith.addf %82, %83 : vector<1x128xf32>
    %85 = arith.index_cast %c1_i32 : i32 to index
    %c0_29 = arith.constant 0 : index
    %c0_30 = arith.constant 0 : index
    %86 = vector.load %arg6[%85, %c0_29, %c0_30] : memref<8x1x128xf32, #tpu.memory_space<vmem>>, vector<1x1x128xf32>
    %87 = vector.shape_cast %86 : vector<1x1x128xf32> to vector<1x128xf32>
    %88 = vector.shape_cast %84 : vector<1x128xf32> to vector<1x1x128xf32>
    tpu.vector_store %arg6[%85, %c0_29, %c0_30], %88 {strides = array<i32>} : memref<8x1x128xf32, #tpu.memory_space<vmem>>, vector<1x1x128xf32>,
    %c2_i32 = arith.constant 2 : i32
    %89 = arith.index_cast %c2_i32 : i32 to index
    %90 = memref.load %arg1[%89] : memref<8xi32, #tpu.memory_space<smem>>
    %91 = arith.index_cast %90 : i32 to index
    %c0_31 = arith.constant 0 : index
    %c0_32 = arith.constant 0 : index
    %92 = vector.load %arg2[%91, %c0_31, %c0_32] : memref<64x1x384xf32, #tpu.memory_space<vmem>>, vector<1x1x384xf32>
    %93 = vector.shape_cast %92 : vector<1x1x384xf32> to vector<1x384xf32>
    %94 = arith.truncf %84 : vector<1x128xf32> to vector<1x128xbf16>
    %c0_33 = arith.constant 0 : index
    %c384_34 = arith.constant 384 : index
    %95 = vector.load %arg4[%c0_33, %c384_34] : memref<128x768xbf16, #tpu.memory_space<vmem>>, vector<128x384xbf16>
    %cst_35 = arith.constant dense<0.000000e+00> : vector<1x384xf32>
    %96 = tpu.matmul %94, %95, %cst_35 {dimension_numbers = #tpu.dot_dimension_numbers<[1], [0], [0], [1], [0, 0, 1, 1], [], []>} : vector<1x128xbf16>, vector<128x384xbf16>, vector<1x384xf32> -> vector<1x384xf32>
    %c0_36 = arith.constant 0 : index
    %c384_37 = arith.constant 384 : index
    %97 = vector.load %arg5[%c0_36, %c384_37] : memref<1x768xf32, #tpu.memory_space<vmem>>, vector<1x384xf32>
    %98 = arith.addf %96, %97 : vector<1x384xf32>
    %99 = vector.extract_strided_slice %93 {offsets = [0, 0], sizes = [1, 128], strides = [1, 1]} : vector<1x384xf32> to vector<1x128xf32>
    %100 = vector.extract_strided_slice %98 {offsets = [0, 0], sizes = [1, 128], strides = [1, 1]} : vector<1x384xf32> to vector<1x128xf32>
    %101 = arith.addf %99, %100 : vector<1x128xf32>
    %cst_38 = arith.constant 5.000000e-01 : f32
    %102 = vector.broadcast %cst_38 : f32 to vector<1x128xf32>
    %103 = arith.mulf %102, %101 : vector<1x128xf32>
    %104 = math.tanh %103 : vector<1x128xf32>
    %cst_39 = arith.constant 1.000000e+00 : f32
    %105 = vector.broadcast %cst_39 : f32 to vector<1x128xf32>
    %106 = arith.addf %104, %105 : vector<1x128xf32>
    %cst_40 = arith.constant 5.000000e-01 : f32
    %107 = vector.broadcast %cst_40 : f32 to vector<1x128xf32>
    %108 = arith.mulf %107, %106 : vector<1x128xf32>
    %109 = vector.extract_strided_slice %93 {offsets = [0, 128], sizes = [1, 128], strides = [1, 1]} : vector<1x384xf32> to vector<1x128xf32>
    %110 = vector.extract_strided_slice %98 {offsets = [0, 128], sizes = [1, 128], strides = [1, 1]} : vector<1x384xf32> to vector<1x128xf32>
    %111 = arith.addf %109, %110 : vector<1x128xf32>
    %cst_41 = arith.constant 5.000000e-01 : f32
    %112 = vector.broadcast %cst_41 : f32 to vector<1x128xf32>
    %113 = arith.mulf %112, %111 : vector<1x128xf32>
    %114 = math.tanh %113 : vector<1x128xf32>
    %cst_42 = arith.constant 1.000000e+00 : f32
    %115 = vector.broadcast %cst_42 : f32 to vector<1x128xf32>
    %116 = arith.addf %114, %115 : vector<1x128xf32>
    %cst_43 = arith.constant 5.000000e-01 : f32
    %117 = vector.broadcast %cst_43 : f32 to vector<1x128xf32>
    %118 = arith.mulf %117, %116 : vector<1x128xf32>
    %119 = vector.extract_strided_slice %93 {offsets = [0, 256], sizes = [1, 128], strides = [1, 1]} : vector<1x384xf32> to vector<1x128xf32>
    %120 = vector.extract_strided_slice %98 {offsets = [0, 256], sizes = [1, 128], strides = [1, 1]} : vector<1x384xf32> to vector<1x128xf32>
    %121 = arith.mulf %108, %120 : vector<1x128xf32>
    %122 = arith.addf %119, %121 : vector<1x128xf32>
    %123 = math.tanh %122 : vector<1x128xf32>
    %cst_44 = arith.constant 1.000000e+00 : f32
    %124 = vector.broadcast %cst_44 : f32 to vector<1x128xf32>
    %125 = arith.subf %124, %118 : vector<1x128xf32>
    %126 = arith.mulf %125, %123 : vector<1x128xf32>
    %127 = arith.mulf %118, %84 : vector<1x128xf32>
    %128 = arith.addf %126, %127 : vector<1x128xf32>
    %129 = arith.index_cast %c2_i32 : i32 to index
    %c0_45 = arith.constant 0 : index
    %c0_46 = arith.constant 0 : index
    %130 = vector.load %arg6[%129, %c0_45, %c0_46] : memref<8x1x128xf32, #tpu.memory_space<vmem>>, vector<1x1x128xf32>
    %131 = vector.shape_cast %130 : vector<1x1x128xf32> to vector<1x128xf32>
    %132 = vector.shape_cast %128 : vector<1x128xf32> to vector<1x1x128xf32>
    tpu.vector_store %arg6[%129, %c0_45, %c0_46], %132 {strides = array<i32>} : memref<8x1x128xf32, #tpu.memory_space<vmem>>, vector<1x1x128xf32>,
    %c3_i32 = arith.constant 3 : i32
    %133 = arith.index_cast %c3_i32 : i32 to index
    %134 = memref.load %arg1[%133] : memref<8xi32, #tpu.memory_space<smem>>
    %135 = arith.index_cast %134 : i32 to index
    %c0_47 = arith.constant 0 : index
    %c0_48 = arith.constant 0 : index
    %136 = vector.load %arg2[%135, %c0_47, %c0_48] : memref<64x1x384xf32, #tpu.memory_space<vmem>>, vector<1x1x384xf32>
    %137 = vector.shape_cast %136 : vector<1x1x384xf32> to vector<1x384xf32>
    %138 = arith.truncf %128 : vector<1x128xf32> to vector<1x128xbf16>
    %c0_49 = arith.constant 0 : index
    %c384_50 = arith.constant 384 : index
    %139 = vector.load %arg4[%c0_49, %c384_50] : memref<128x768xbf16, #tpu.memory_space<vmem>>, vector<128x384xbf16>
    %cst_51 = arith.constant dense<0.000000e+00> : vector<1x384xf32>
    %140 = tpu.matmul %138, %139, %cst_51 {dimension_numbers = #tpu.dot_dimension_numbers<[1], [0], [0], [1], [0, 0, 1, 1], [], []>} : vector<1x128xbf16>, vector<128x384xbf16>, vector<1x384xf32> -> vector<1x384xf32>
    %c0_52 = arith.constant 0 : index
    %c384_53 = arith.constant 384 : index
    %141 = vector.load %arg5[%c0_52, %c384_53] : memref<1x768xf32, #tpu.memory_space<vmem>>, vector<1x384xf32>
    %142 = arith.addf %140, %141 : vector<1x384xf32>
    %143 = vector.extract_strided_slice %137 {offsets = [0, 0], sizes = [1, 128], strides = [1, 1]} : vector<1x384xf32> to vector<1x128xf32>
    %144 = vector.extract_strided_slice %142 {offsets = [0, 0], sizes = [1, 128], strides = [1, 1]} : vector<1x384xf32> to vector<1x128xf32>
    %145 = arith.addf %143, %144 : vector<1x128xf32>
    %cst_54 = arith.constant 5.000000e-01 : f32
    %146 = vector.broadcast %cst_54 : f32 to vector<1x128xf32>
    %147 = arith.mulf %146, %145 : vector<1x128xf32>
    %148 = math.tanh %147 : vector<1x128xf32>
    %cst_55 = arith.constant 1.000000e+00 : f32
    %149 = vector.broadcast %cst_55 : f32 to vector<1x128xf32>
    %150 = arith.addf %148, %149 : vector<1x128xf32>
    %cst_56 = arith.constant 5.000000e-01 : f32
    %151 = vector.broadcast %cst_56 : f32 to vector<1x128xf32>
    %152 = arith.mulf %151, %150 : vector<1x128xf32>
    %153 = vector.extract_strided_slice %137 {offsets = [0, 128], sizes = [1, 128], strides = [1, 1]} : vector<1x384xf32> to vector<1x128xf32>
    %154 = vector.extract_strided_slice %142 {offsets = [0, 128], sizes = [1, 128], strides = [1, 1]} : vector<1x384xf32> to vector<1x128xf32>
    %155 = arith.addf %153, %154 : vector<1x128xf32>
    %cst_57 = arith.constant 5.000000e-01 : f32
    %156 = vector.broadcast %cst_57 : f32 to vector<1x128xf32>
    %157 = arith.mulf %156, %155 : vector<1x128xf32>
    %158 = math.tanh %157 : vector<1x128xf32>
    %cst_58 = arith.constant 1.000000e+00 : f32
    %159 = vector.broadcast %cst_58 : f32 to vector<1x128xf32>
    %160 = arith.addf %158, %159 : vector<1x128xf32>
    %cst_59 = arith.constant 5.000000e-01 : f32
    %161 = vector.broadcast %cst_59 : f32 to vector<1x128xf32>
    %162 = arith.mulf %161, %160 : vector<1x128xf32>
    %163 = vector.extract_strided_slice %137 {offsets = [0, 256], sizes = [1, 128], strides = [1, 1]} : vector<1x384xf32> to vector<1x128xf32>
    %164 = vector.extract_strided_slice %142 {offsets = [0, 256], sizes = [1, 128], strides = [1, 1]} : vector<1x384xf32> to vector<1x128xf32>
    %165 = arith.mulf %152, %164 : vector<1x128xf32>
    %166 = arith.addf %163, %165 : vector<1x128xf32>
    %167 = math.tanh %166 : vector<1x128xf32>
    %cst_60 = arith.constant 1.000000e+00 : f32
    %168 = vector.broadcast %cst_60 : f32 to vector<1x128xf32>
    %169 = arith.subf %168, %162 : vector<1x128xf32>
    %170 = arith.mulf %169, %167 : vector<1x128xf32>
    %171 = arith.mulf %162, %128 : vector<1x128xf32>
    %172 = arith.addf %170, %171 : vector<1x128xf32>
    %173 = arith.index_cast %c3_i32 : i32 to index
    %c0_61 = arith.constant 0 : index
    %c0_62 = arith.constant 0 : index
    %174 = vector.load %arg6[%173, %c0_61, %c0_62] : memref<8x1x128xf32, #tpu.memory_space<vmem>>, vector<1x1x128xf32>
    %175 = vector.shape_cast %174 : vector<1x1x128xf32> to vector<1x128xf32>
    %176 = vector.shape_cast %172 : vector<1x128xf32> to vector<1x1x128xf32>
    tpu.vector_store %arg6[%173, %c0_61, %c0_62], %176 {strides = array<i32>} : memref<8x1x128xf32, #tpu.memory_space<vmem>>, vector<1x1x128xf32>,
    %c4_i32 = arith.constant 4 : i32
    %177 = arith.index_cast %c4_i32 : i32 to index
    %178 = memref.load %arg1[%177] : memref<8xi32, #tpu.memory_space<smem>>
    %179 = arith.index_cast %178 : i32 to index
    %c0_63 = arith.constant 0 : index
    %c0_64 = arith.constant 0 : index
    %180 = vector.load %arg2[%179, %c0_63, %c0_64] : memref<64x1x384xf32, #tpu.memory_space<vmem>>, vector<1x1x384xf32>
    %181 = vector.shape_cast %180 : vector<1x1x384xf32> to vector<1x384xf32>
    %182 = arith.truncf %172 : vector<1x128xf32> to vector<1x128xbf16>
    %c0_65 = arith.constant 0 : index
    %c384_66 = arith.constant 384 : index
    %183 = vector.load %arg4[%c0_65, %c384_66] : memref<128x768xbf16, #tpu.memory_space<vmem>>, vector<128x384xbf16>
    %cst_67 = arith.constant dense<0.000000e+00> : vector<1x384xf32>
    %184 = tpu.matmul %182, %183, %cst_67 {dimension_numbers = #tpu.dot_dimension_numbers<[1], [0], [0], [1], [0, 0, 1, 1], [], []>} : vector<1x128xbf16>, vector<128x384xbf16>, vector<1x384xf32> -> vector<1x384xf32>
    %c0_68 = arith.constant 0 : index
    %c384_69 = arith.constant 384 : index
    %185 = vector.load %arg5[%c0_68, %c384_69] : memref<1x768xf32, #tpu.memory_space<vmem>>, vector<1x384xf32>
    %186 = arith.addf %184, %185 : vector<1x384xf32>
    %187 = vector.extract_strided_slice %181 {offsets = [0, 0], sizes = [1, 128], strides = [1, 1]} : vector<1x384xf32> to vector<1x128xf32>
    %188 = vector.extract_strided_slice %186 {offsets = [0, 0], sizes = [1, 128], strides = [1, 1]} : vector<1x384xf32> to vector<1x128xf32>
    %189 = arith.addf %187, %188 : vector<1x128xf32>
    %cst_70 = arith.constant 5.000000e-01 : f32
    %190 = vector.broadcast %cst_70 : f32 to vector<1x128xf32>
    %191 = arith.mulf %190, %189 : vector<1x128xf32>
    %192 = math.tanh %191 : vector<1x128xf32>
    %cst_71 = arith.constant 1.000000e+00 : f32
    %193 = vector.broadcast %cst_71 : f32 to vector<1x128xf32>
    %194 = arith.addf %192, %193 : vector<1x128xf32>
    %cst_72 = arith.constant 5.000000e-01 : f32
    %195 = vector.broadcast %cst_72 : f32 to vector<1x128xf32>
    %196 = arith.mulf %195, %194 : vector<1x128xf32>
    %197 = vector.extract_strided_slice %181 {offsets = [0, 128], sizes = [1, 128], strides = [1, 1]} : vector<1x384xf32> to vector<1x128xf32>
    %198 = vector.extract_strided_slice %186 {offsets = [0, 128], sizes = [1, 128], strides = [1, 1]} : vector<1x384xf32> to vector<1x128xf32>
    %199 = arith.addf %197, %198 : vector<1x128xf32>
    %cst_73 = arith.constant 5.000000e-01 : f32
    %200 = vector.broadcast %cst_73 : f32 to vector<1x128xf32>
    %201 = arith.mulf %200, %199 : vector<1x128xf32>
    %202 = math.tanh %201 : vector<1x128xf32>
    %cst_74 = arith.constant 1.000000e+00 : f32
    %203 = vector.broadcast %cst_74 : f32 to vector<1x128xf32>
    %204 = arith.addf %202, %203 : vector<1x128xf32>
    %cst_75 = arith.constant 5.000000e-01 : f32
    %205 = vector.broadcast %cst_75 : f32 to vector<1x128xf32>
    %206 = arith.mulf %205, %204 : vector<1x128xf32>
    %207 = vector.extract_strided_slice %181 {offsets = [0, 256], sizes = [1, 128], strides = [1, 1]} : vector<1x384xf32> to vector<1x128xf32>
    %208 = vector.extract_strided_slice %186 {offsets = [0, 256], sizes = [1, 128], strides = [1, 1]} : vector<1x384xf32> to vector<1x128xf32>
    %209 = arith.mulf %196, %208 : vector<1x128xf32>
    %210 = arith.addf %207, %209 : vector<1x128xf32>
    %211 = math.tanh %210 : vector<1x128xf32>
    %cst_76 = arith.constant 1.000000e+00 : f32
    %212 = vector.broadcast %cst_76 : f32 to vector<1x128xf32>
    %213 = arith.subf %212, %206 : vector<1x128xf32>
    %214 = arith.mulf %213, %211 : vector<1x128xf32>
    %215 = arith.mulf %206, %172 : vector<1x128xf32>
    %216 = arith.addf %214, %215 : vector<1x128xf32>
    %217 = arith.index_cast %c4_i32 : i32 to index
    %c0_77 = arith.constant 0 : index
    %c0_78 = arith.constant 0 : index
    %218 = vector.load %arg6[%217, %c0_77, %c0_78] : memref<8x1x128xf32, #tpu.memory_space<vmem>>, vector<1x1x128xf32>
    %219 = vector.shape_cast %218 : vector<1x1x128xf32> to vector<1x128xf32>
    %220 = vector.shape_cast %216 : vector<1x128xf32> to vector<1x1x128xf32>
    tpu.vector_store %arg6[%217, %c0_77, %c0_78], %220 {strides = array<i32>} : memref<8x1x128xf32, #tpu.memory_space<vmem>>, vector<1x1x128xf32>,
    %c5_i32 = arith.constant 5 : i32
    %221 = arith.index_cast %c5_i32 : i32 to index
    %222 = memref.load %arg1[%221] : memref<8xi32, #tpu.memory_space<smem>>
    %223 = arith.index_cast %222 : i32 to index
    %c0_79 = arith.constant 0 : index
    %c0_80 = arith.constant 0 : index
    %224 = vector.load %arg2[%223, %c0_79, %c0_80] : memref<64x1x384xf32, #tpu.memory_space<vmem>>, vector<1x1x384xf32>
    %225 = vector.shape_cast %224 : vector<1x1x384xf32> to vector<1x384xf32>
    %226 = arith.truncf %216 : vector<1x128xf32> to vector<1x128xbf16>
    %c0_81 = arith.constant 0 : index
    %c384_82 = arith.constant 384 : index
    %227 = vector.load %arg4[%c0_81, %c384_82] : memref<128x768xbf16, #tpu.memory_space<vmem>>, vector<128x384xbf16>
    %cst_83 = arith.constant dense<0.000000e+00> : vector<1x384xf32>
    %228 = tpu.matmul %226, %227, %cst_83 {dimension_numbers = #tpu.dot_dimension_numbers<[1], [0], [0], [1], [0, 0, 1, 1], [], []>} : vector<1x128xbf16>, vector<128x384xbf16>, vector<1x384xf32> -> vector<1x384xf32>
    %c0_84 = arith.constant 0 : index
    %c384_85 = arith.constant 384 : index
    %229 = vector.load %arg5[%c0_84, %c384_85] : memref<1x768xf32, #tpu.memory_space<vmem>>, vector<1x384xf32>
    %230 = arith.addf %228, %229 : vector<1x384xf32>
    %231 = vector.extract_strided_slice %225 {offsets = [0, 0], sizes = [1, 128], strides = [1, 1]} : vector<1x384xf32> to vector<1x128xf32>
    %232 = vector.extract_strided_slice %230 {offsets = [0, 0], sizes = [1, 128], strides = [1, 1]} : vector<1x384xf32> to vector<1x128xf32>
    %233 = arith.addf %231, %232 : vector<1x128xf32>
    %cst_86 = arith.constant 5.000000e-01 : f32
    %234 = vector.broadcast %cst_86 : f32 to vector<1x128xf32>
    %235 = arith.mulf %234, %233 : vector<1x128xf32>
    %236 = math.tanh %235 : vector<1x128xf32>
    %cst_87 = arith.constant 1.000000e+00 : f32
    %237 = vector.broadcast %cst_87 : f32 to vector<1x128xf32>
    %238 = arith.addf %236, %237 : vector<1x128xf32>
    %cst_88 = arith.constant 5.000000e-01 : f32
    %239 = vector.broadcast %cst_88 : f32 to vector<1x128xf32>
    %240 = arith.mulf %239, %238 : vector<1x128xf32>
    %241 = vector.extract_strided_slice %225 {offsets = [0, 128], sizes = [1, 128], strides = [1, 1]} : vector<1x384xf32> to vector<1x128xf32>
    %242 = vector.extract_strided_slice %230 {offsets = [0, 128], sizes = [1, 128], strides = [1, 1]} : vector<1x384xf32> to vector<1x128xf32>
    %243 = arith.addf %241, %242 : vector<1x128xf32>
    %cst_89 = arith.constant 5.000000e-01 : f32
    %244 = vector.broadcast %cst_89 : f32 to vector<1x128xf32>
    %245 = arith.mulf %244, %243 : vector<1x128xf32>
    %246 = math.tanh %245 : vector<1x128xf32>
    %cst_90 = arith.constant 1.000000e+00 : f32
    %247 = vector.broadcast %cst_90 : f32 to vector<1x128xf32>
    %248 = arith.addf %246, %247 : vector<1x128xf32>
    %cst_91 = arith.constant 5.000000e-01 : f32
    %249 = vector.broadcast %cst_91 : f32 to vector<1x128xf32>
    %250 = arith.mulf %249, %248 : vector<1x128xf32>
    %251 = vector.extract_strided_slice %225 {offsets = [0, 256], sizes = [1, 128], strides = [1, 1]} : vector<1x384xf32> to vector<1x128xf32>
    %252 = vector.extract_strided_slice %230 {offsets = [0, 256], sizes = [1, 128], strides = [1, 1]} : vector<1x384xf32> to vector<1x128xf32>
    %253 = arith.mulf %240, %252 : vector<1x128xf32>
    %254 = arith.addf %251, %253 : vector<1x128xf32>
    %255 = math.tanh %254 : vector<1x128xf32>
    %cst_92 = arith.constant 1.000000e+00 : f32
    %256 = vector.broadcast %cst_92 : f32 to vector<1x128xf32>
    %257 = arith.subf %256, %250 : vector<1x128xf32>
    %258 = arith.mulf %257, %255 : vector<1x128xf32>
    %259 = arith.mulf %250, %216 : vector<1x128xf32>
    %260 = arith.addf %258, %259 : vector<1x128xf32>
    %261 = arith.index_cast %c5_i32 : i32 to index
    %c0_93 = arith.constant 0 : index
    %c0_94 = arith.constant 0 : index
    %262 = vector.load %arg6[%261, %c0_93, %c0_94] : memref<8x1x128xf32, #tpu.memory_space<vmem>>, vector<1x1x128xf32>
    %263 = vector.shape_cast %262 : vector<1x1x128xf32> to vector<1x128xf32>
    %264 = vector.shape_cast %260 : vector<1x128xf32> to vector<1x1x128xf32>
    tpu.vector_store %arg6[%261, %c0_93, %c0_94], %264 {strides = array<i32>} : memref<8x1x128xf32, #tpu.memory_space<vmem>>, vector<1x1x128xf32>,
    %c6_i32 = arith.constant 6 : i32
    %265 = arith.index_cast %c6_i32 : i32 to index
    %266 = memref.load %arg1[%265] : memref<8xi32, #tpu.memory_space<smem>>
    %267 = arith.index_cast %266 : i32 to index
    %c0_95 = arith.constant 0 : index
    %c0_96 = arith.constant 0 : index
    %268 = vector.load %arg2[%267, %c0_95, %c0_96] : memref<64x1x384xf32, #tpu.memory_space<vmem>>, vector<1x1x384xf32>
    %269 = vector.shape_cast %268 : vector<1x1x384xf32> to vector<1x384xf32>
    %270 = arith.truncf %260 : vector<1x128xf32> to vector<1x128xbf16>
    %c0_97 = arith.constant 0 : index
    %c384_98 = arith.constant 384 : index
    %271 = vector.load %arg4[%c0_97, %c384_98] : memref<128x768xbf16, #tpu.memory_space<vmem>>, vector<128x384xbf16>
    %cst_99 = arith.constant dense<0.000000e+00> : vector<1x384xf32>
    %272 = tpu.matmul %270, %271, %cst_99 {dimension_numbers = #tpu.dot_dimension_numbers<[1], [0], [0], [1], [0, 0, 1, 1], [], []>} : vector<1x128xbf16>, vector<128x384xbf16>, vector<1x384xf32> -> vector<1x384xf32>
    %c0_100 = arith.constant 0 : index
    %c384_101 = arith.constant 384 : index
    %273 = vector.load %arg5[%c0_100, %c384_101] : memref<1x768xf32, #tpu.memory_space<vmem>>, vector<1x384xf32>
    %274 = arith.addf %272, %273 : vector<1x384xf32>
    %275 = vector.extract_strided_slice %269 {offsets = [0, 0], sizes = [1, 128], strides = [1, 1]} : vector<1x384xf32> to vector<1x128xf32>
    %276 = vector.extract_strided_slice %274 {offsets = [0, 0], sizes = [1, 128], strides = [1, 1]} : vector<1x384xf32> to vector<1x128xf32>
    %277 = arith.addf %275, %276 : vector<1x128xf32>
    %cst_102 = arith.constant 5.000000e-01 : f32
    %278 = vector.broadcast %cst_102 : f32 to vector<1x128xf32>
    %279 = arith.mulf %278, %277 : vector<1x128xf32>
    %280 = math.tanh %279 : vector<1x128xf32>
    %cst_103 = arith.constant 1.000000e+00 : f32
    %281 = vector.broadcast %cst_103 : f32 to vector<1x128xf32>
    %282 = arith.addf %280, %281 : vector<1x128xf32>
    %cst_104 = arith.constant 5.000000e-01 : f32
    %283 = vector.broadcast %cst_104 : f32 to vector<1x128xf32>
    %284 = arith.mulf %283, %282 : vector<1x128xf32>
    %285 = vector.extract_strided_slice %269 {offsets = [0, 128], sizes = [1, 128], strides = [1, 1]} : vector<1x384xf32> to vector<1x128xf32>
    %286 = vector.extract_strided_slice %274 {offsets = [0, 128], sizes = [1, 128], strides = [1, 1]} : vector<1x384xf32> to vector<1x128xf32>
    %287 = arith.addf %285, %286 : vector<1x128xf32>
    %cst_105 = arith.constant 5.000000e-01 : f32
    %288 = vector.broadcast %cst_105 : f32 to vector<1x128xf32>
    %289 = arith.mulf %288, %287 : vector<1x128xf32>
    %290 = math.tanh %289 : vector<1x128xf32>
    %cst_106 = arith.constant 1.000000e+00 : f32
    %291 = vector.broadcast %cst_106 : f32 to vector<1x128xf32>
    %292 = arith.addf %290, %291 : vector<1x128xf32>
    %cst_107 = arith.constant 5.000000e-01 : f32
    %293 = vector.broadcast %cst_107 : f32 to vector<1x128xf32>
    %294 = arith.mulf %293, %292 : vector<1x128xf32>
    %295 = vector.extract_strided_slice %269 {offsets = [0, 256], sizes = [1, 128], strides = [1, 1]} : vector<1x384xf32> to vector<1x128xf32>
    %296 = vector.extract_strided_slice %274 {offsets = [0, 256], sizes = [1, 128], strides = [1, 1]} : vector<1x384xf32> to vector<1x128xf32>
    %297 = arith.mulf %284, %296 : vector<1x128xf32>
    %298 = arith.addf %295, %297 : vector<1x128xf32>
    %299 = math.tanh %298 : vector<1x128xf32>
    %cst_108 = arith.constant 1.000000e+00 : f32
    %300 = vector.broadcast %cst_108 : f32 to vector<1x128xf32>
    %301 = arith.subf %300, %294 : vector<1x128xf32>
    %302 = arith.mulf %301, %299 : vector<1x128xf32>
    %303 = arith.mulf %294, %260 : vector<1x128xf32>
    %304 = arith.addf %302, %303 : vector<1x128xf32>
    %305 = arith.index_cast %c6_i32 : i32 to index
    %c0_109 = arith.constant 0 : index
    %c0_110 = arith.constant 0 : index
    %306 = vector.load %arg6[%305, %c0_109, %c0_110] : memref<8x1x128xf32, #tpu.memory_space<vmem>>, vector<1x1x128xf32>
    %307 = vector.shape_cast %306 : vector<1x1x128xf32> to vector<1x128xf32>
    %308 = vector.shape_cast %304 : vector<1x128xf32> to vector<1x1x128xf32>
    tpu.vector_store %arg6[%305, %c0_109, %c0_110], %308 {strides = array<i32>} : memref<8x1x128xf32, #tpu.memory_space<vmem>>, vector<1x1x128xf32>,
    %c7_i32 = arith.constant 7 : i32
    %309 = arith.index_cast %c7_i32 : i32 to index
    %310 = memref.load %arg1[%309] : memref<8xi32, #tpu.memory_space<smem>>
    %311 = arith.index_cast %310 : i32 to index
    %c0_111 = arith.constant 0 : index
    %c0_112 = arith.constant 0 : index
    %312 = vector.load %arg2[%311, %c0_111, %c0_112] : memref<64x1x384xf32, #tpu.memory_space<vmem>>, vector<1x1x384xf32>
    %313 = vector.shape_cast %312 : vector<1x1x384xf32> to vector<1x384xf32>
    %314 = arith.truncf %304 : vector<1x128xf32> to vector<1x128xbf16>
    %c0_113 = arith.constant 0 : index
    %c384_114 = arith.constant 384 : index
    %315 = vector.load %arg4[%c0_113, %c384_114] : memref<128x768xbf16, #tpu.memory_space<vmem>>, vector<128x384xbf16>
    %cst_115 = arith.constant dense<0.000000e+00> : vector<1x384xf32>
    %316 = tpu.matmul %314, %315, %cst_115 {dimension_numbers = #tpu.dot_dimension_numbers<[1], [0], [0], [1], [0, 0, 1, 1], [], []>} : vector<1x128xbf16>, vector<128x384xbf16>, vector<1x384xf32> -> vector<1x384xf32>
    %c0_116 = arith.constant 0 : index
    %c384_117 = arith.constant 384 : index
    %317 = vector.load %arg5[%c0_116, %c384_117] : memref<1x768xf32, #tpu.memory_space<vmem>>, vector<1x384xf32>
    %318 = arith.addf %316, %317 : vector<1x384xf32>
    %319 = vector.extract_strided_slice %313 {offsets = [0, 0], sizes = [1, 128], strides = [1, 1]} : vector<1x384xf32> to vector<1x128xf32>
    %320 = vector.extract_strided_slice %318 {offsets = [0, 0], sizes = [1, 128], strides = [1, 1]} : vector<1x384xf32> to vector<1x128xf32>
    %321 = arith.addf %319, %320 : vector<1x128xf32>
    %cst_118 = arith.constant 5.000000e-01 : f32
    %322 = vector.broadcast %cst_118 : f32 to vector<1x128xf32>
    %323 = arith.mulf %322, %321 : vector<1x128xf32>
    %324 = math.tanh %323 : vector<1x128xf32>
    %cst_119 = arith.constant 1.000000e+00 : f32
    %325 = vector.broadcast %cst_119 : f32 to vector<1x128xf32>
    %326 = arith.addf %324, %325 : vector<1x128xf32>
    %cst_120 = arith.constant 5.000000e-01 : f32
    %327 = vector.broadcast %cst_120 : f32 to vector<1x128xf32>
    %328 = arith.mulf %327, %326 : vector<1x128xf32>
    %329 = vector.extract_strided_slice %313 {offsets = [0, 128], sizes = [1, 128], strides = [1, 1]} : vector<1x384xf32> to vector<1x128xf32>
    %330 = vector.extract_strided_slice %318 {offsets = [0, 128], sizes = [1, 128], strides = [1, 1]} : vector<1x384xf32> to vector<1x128xf32>
    %331 = arith.addf %329, %330 : vector<1x128xf32>
    %cst_121 = arith.constant 5.000000e-01 : f32
    %332 = vector.broadcast %cst_121 : f32 to vector<1x128xf32>
    %333 = arith.mulf %332, %331 : vector<1x128xf32>
    %334 = math.tanh %333 : vector<1x128xf32>
    %cst_122 = arith.constant 1.000000e+00 : f32
    %335 = vector.broadcast %cst_122 : f32 to vector<1x128xf32>
    %336 = arith.addf %334, %335 : vector<1x128xf32>
    %cst_123 = arith.constant 5.000000e-01 : f32
    %337 = vector.broadcast %cst_123 : f32 to vector<1x128xf32>
    %338 = arith.mulf %337, %336 : vector<1x128xf32>
    %339 = vector.extract_strided_slice %313 {offsets = [0, 256], sizes = [1, 128], strides = [1, 1]} : vector<1x384xf32> to vector<1x128xf32>
    %340 = vector.extract_strided_slice %318 {offsets = [0, 256], sizes = [1, 128], strides = [1, 1]} : vector<1x384xf32> to vector<1x128xf32>
    %341 = arith.mulf %328, %340 : vector<1x128xf32>
    %342 = arith.addf %339, %341 : vector<1x128xf32>
    %343 = math.tanh %342 : vector<1x128xf32>
    %cst_124 = arith.constant 1.000000e+00 : f32
    %344 = vector.broadcast %cst_124 : f32 to vector<1x128xf32>
    %345 = arith.subf %344, %338 : vector<1x128xf32>
    %346 = arith.mulf %345, %343 : vector<1x128xf32>
    %347 = arith.mulf %338, %304 : vector<1x128xf32>
    %348 = arith.addf %346, %347 : vector<1x128xf32>
    %349 = arith.index_cast %c7_i32 : i32 to index
    %c0_125 = arith.constant 0 : index
    %c0_126 = arith.constant 0 : index
    %350 = vector.load %arg6[%349, %c0_125, %c0_126] : memref<8x1x128xf32, #tpu.memory_space<vmem>>, vector<1x1x128xf32>
    %351 = vector.shape_cast %350 : vector<1x1x128xf32> to vector<1x128xf32>
    %352 = vector.shape_cast %348 : vector<1x128xf32> to vector<1x1x128xf32>
    tpu.vector_store %arg6[%349, %c0_125, %c0_126], %352 {strides = array<i32>} : memref<8x1x128xf32, #tpu.memory_space<vmem>>, vector<1x1x128xf32>,
    %c8_i32 = arith.constant 8 : i32
    return
  }
  func.func @transform_0(%arg0: i32, %arg1: memref<8xi32, #tpu.memory_space<smem>>) -> (i32, i32, i32) {
    %c0_i32 = arith.constant 0 : i32
    %c0_i32_0 = arith.constant 0 : i32
    %c0_i32_1 = arith.constant 0 : i32
    %c0_i32_2 = arith.constant 0 : i32
    return %c0_i32, %c0_i32_0, %c0_i32_1 : i32, i32, i32
  }
  func.func @transform_1(%arg0: i32, %arg1: memref<8xi32, #tpu.memory_space<smem>>) -> (i32, i32) {
    %c0_i32 = arith.constant 0 : i32
    %c0_i32_0 = arith.constant 0 : i32
    %c0_i32_1 = arith.constant 0 : i32
    return %c0_i32, %c0_i32_0 : i32, i32
  }
  func.func @transform_2(%arg0: i32, %arg1: memref<8xi32, #tpu.memory_space<smem>>) -> (i32, i32) {
    %c0_i32 = arith.constant 0 : i32
    %c0_i32_0 = arith.constant 0 : i32
    %c0_i32_1 = arith.constant 0 : i32
    return %c0_i32, %c0_i32_0 : i32, i32
  }
  func.func @transform_3(%arg0: i32, %arg1: memref<8xi32, #tpu.memory_space<smem>>) -> (i32, i32) {
    %c0_i32 = arith.constant 0 : i32
    %c0_i32_0 = arith.constant 0 : i32
    %c0_i32_1 = arith.constant 0 : i32
    return %c0_i32, %c0_i32_0 : i32, i32
  }
  func.func @transform_4(%arg0: i32, %arg1: memref<8xi32, #tpu.memory_space<smem>>) -> (i32, i32, i32) {
    %c0_i32 = arith.constant 0 : i32
    %c0_i32_0 = arith.constant 0 : i32
    %c0_i32_1 = arith.constant 0 : i32
    %c0_i32_2 = arith.constant 0 : i32
    return %c0_i32, %c0_i32_0, %c0_i32_1 : i32, i32, i32
  }
}

</mosaic_0001>

<llo_original>
// kernel: tpu_custom_call.1
$region0: #{tpu_custom_call.1}
  #allocation0 [shape = 'u32[]', space=smem, size = 0x4, offset = 0x4, fixed_abs, tag = 'smem constant byte address 0x4 - core index']
  #allocation1 [shape = 'u32[144,128]{1,0:T(1,128)}', space=vmem, size = 0x12000, scoped, tag = 'internal scratch']
  #allocation2 [shape = 's32[1]{0}', space=sflag, size = 0x4, scoped, tag = 'scoped memory for tpu_custom_call.1']
  #allocation3 [shape = 'u8[512]{0}', space=smem, size = 0x200, scoped, tag = 'prefetched SMEM operand 0']
  %s0 = inlined_call_operand.hbm [shape: s32[8], index: 0, kind: input, shape index: {}]
  %s1 = inlined_call_operand.hbm [shape: f32[64,1,384], index: 1, kind: input, shape index: {}]
  %s2 = inlined_call_operand.vmem [shape: f32[1,128], index: 2, kind: input, shape index: {}]
  %s3 = inlined_call_operand.hbm [shape: bf16[128,768], index: 3, kind: input, shape index: {}]
  %s4 = inlined_call_operand.vmem [shape: f32[1,768], index: 4, kind: input, shape index: {}]
  %s5 = inlined_call_operand.hbm [shape: f32[8,1,128], index: 5, kind: output, shape index: {}]
  %s6 = sld [smem:[#allocation0]]
  $region34: #{tpu_custom_call.1} parent=0
    _
  %s8 = ssub.s32 1, %s6
  %s9 = scalar_select 0, %s8, %s6
  %11 = dma.hbm_to_smem %s0, 16, [#allocation3], [#allocation2]
  %12 = dma.done [#allocation2], 16
  %13 = sfence
  $region1: #{tpu_custom_call.1} parent=0
    #allocation4 [shape = 'u8[98304]{0}', space=vmem, size = 0x18000, scoped, tag = 'input window, operand 1, single buffered']
    #allocation5 [shape = 's32[1]{0}', space=sflag, size = 0x4, scoped, tag = 'scoped memory for tpu_custom_call.1']
    #allocation6 [shape = 's32[1]{0}', space=sflag, size = 0x4, scoped, tag = 'scoped memory for tpu_custom_call.1']
    #allocation7 [shape = 'u8[196608]{0}', space=vmem, size = 0x30000, scoped, tag = 'input window, operand 3, single buffered']
    #allocation8 [shape = 's32[1]{0}', space=sflag, size = 0x4, scoped, tag = 'scoped memory for tpu_custom_call.1']
    #allocation9 [shape = 'u8[4096]{0}', space=vmem, size = 0x1000, scoped, tag = 'output window, operand 0, single buffered']
    %14 = vsyncpa [#allocation5], 0
    %15 = vsyncpa [#allocation8], 0
    %16 = vsyncpa [#allocation6], 0
    // Predicated region
    $region2: #{tpu_custom_call.1} parent=1 // pred_check
      _
    $region3: #{tpu_custom_call.1} parent=1 // pred_check_branch
      %18 = sbr.rel (0) target = $region5
    $region4: #{tpu_custom_call.1} parent=1 // pred_region
      %s20 = ssub.s32 3072, 3072
      %21 = vsyncadd [#allocation5], %s20
      %s22 = sshll.u32 [#allocation4], 4
      %s23 = int_to_ptr.vmem [resolvable:$true] %s22
      %28 = dma.hbm_to_vmem [thread:$0]  %s1, 3072, %s23, [#allocation5], 48, 48, 3
    $region5: #{tpu_custom_call.1} parent=1 // pred_fallthru
      _
    // Predicated region
    $region6: #{tpu_custom_call.1} parent=1 // pred_check
      _
    $region7: #{tpu_custom_call.1} parent=1 // pred_check_branch
      %30 = sbr.rel (0) target = $region9
    $region8: #{tpu_custom_call.1} parent=1 // pred_region
      _
    $region9: #{tpu_custom_call.1} parent=1 // pred_fallthru
      _
    // Predicated region
    $region10: #{tpu_custom_call.1} parent=1 // pred_check
      _
    $region11: #{tpu_custom_call.1} parent=1 // pred_check_branch
      %32 = sbr.rel (0) target = $region13
    $region12: #{tpu_custom_call.1} parent=1 // pred_region
      %s34 = ssub.s32 6144, 6144
      %35 = vsyncadd [#allocation8], %s34
      %s36 = sshll.u32 [#allocation7], 4
      %s37 = int_to_ptr.vmem [resolvable:$true] %s36
      %42 = dma.hbm_to_vmem [thread:$0]  %s3, 6144, %s37, [#allocation8], 384, 384, 24
    $region13: #{tpu_custom_call.1} parent=1 // pred_fallthru
      _
    // Predicated region
    $region14: #{tpu_custom_call.1} parent=1 // pred_check
      _
    $region15: #{tpu_custom_call.1} parent=1 // pred_check_branch
      %44 = sbr.rel (0) target = $region17
    $region16: #{tpu_custom_call.1} parent=1 // pred_region
      _
    $region17: #{tpu_custom_call.1} parent=1 // pred_fallthru
      _
    // Predicated region
    $region18: #{tpu_custom_call.1} parent=1 // pred_check
      _
    $region19: #{tpu_custom_call.1} parent=1 // pred_check_branch
      %46 = sbr.rel (0) target = $region21
    $region20: #{tpu_custom_call.1} parent=1 // pred_region
      %47 = dma.done [#allocation5], 3072
    $region21: #{tpu_custom_call.1} parent=1 // pred_fallthru
      _
    // Predicated region
    $region22: #{tpu_custom_call.1} parent=1 // pred_check
      _
    $region23: #{tpu_custom_call.1} parent=1 // pred_check_branch
      %49 = sbr.rel (0) target = $region25
    $region24: #{tpu_custom_call.1} parent=1 // pred_region
      %50 = dma.done [#allocation8], 6144
    $region25: #{tpu_custom_call.1} parent=1 // pred_fallthru
      _
    %v52 = vld [vmem:[%s2] sm:$0x1]
    %s53 = sld [smem:[#allocation3]]
    %s54 = smul.u32 %s53, 3
    %s55 = scalar_lea.vmem [#allocation4], %s54
    %v56 = vld [vmem:[%s55] sm:$0x7]
    %v57 = vpack.c.bf16 %v52, %v52
    %v58 = vld [vmem:[#allocation7 + $0xc] sm:$0xff]
    %v59 = vld [vmem:[#allocation7 + $0x14] sm:$0xf]
    %v60 = vld [vmem:[#allocation7 + $0x24] sm:$0xff]
    %v61 = vld [vmem:[#allocation7 + $0x2c] sm:$0xf]
    %v62 = vld [vmem:[#allocation7 + $0x3c] sm:$0xff]
    %v63 = vld [vmem:[#allocation7 + $0x44] sm:$0xf]
    %v64 = vld [vmem:[#allocation7 + $0x54] sm:$0xff]
    %v65 = vld [vmem:[#allocation7 + $0x5c] sm:$0xf]
    %v66 = vld [vmem:[#allocation7 + $0x6c] sm:$0xff]
    %v67 = vld [vmem:[#allocation7 + $0x74] sm:$0xf]
    %v68 = vld [vmem:[#allocation7 + $0x84] sm:$0xff]
    %v69 = vld [vmem:[#allocation7 + $0x8c] sm:$0xf]
    %v70 = vld [vmem:[#allocation7 + $0x9c] sm:$0xff]
    %v71 = vld [vmem:[#allocation7 + $0xa4] sm:$0xf]
    %v72 = vld [vmem:[#allocation7 + $0xb4] sm:$0xff]
    %v73 = vld [vmem:[#allocation7 + $0xbc] sm:$0xf]
    %v74 = vld [vmem:[#allocation7 + $0xcc] sm:$0xff]
    %v75 = vld [vmem:[#allocation7 + $0xd4] sm:$0xf]
    %v76 = vld [vmem:[#allocation7 + $0xe4] sm:$0xff]
    %v77 = vld [vmem:[#allocation7 + $0xec] sm:$0xf]
    %v78 = vld [vmem:[#allocation7 + $0xfc] sm:$0xff]
    %v79 = vld [vmem:[#allocation7 + $0x104] sm:$0xf]
    %v80 = vld [vmem:[#allocation7 + $0x114] sm:$0xff]
    %v81 = vld [vmem:[#allocation7 + $0x11c] sm:$0xf]
    %v82 = vld [vmem:[#allocation7 + $0x12c] sm:$0xff]
    %v83 = vld [vmem:[#allocation7 + $0x134] sm:$0xf]
    %v84 = vld [vmem:[#allocation7 + $0x144] sm:$0xff]
    %v85 = vld [vmem:[#allocation7 + $0x14c] sm:$0xf]
    %v86 = vld [vmem:[#allocation7 + $0x15c] sm:$0xff]
    %v87 = vld [vmem:[#allocation7 + $0x164] sm:$0xf]
    %v88 = vld [vmem:[#allocation7 + $0x174] sm:$0xff]
    %v89 = vld [vmem:[#allocation7 + $0x17c] sm:$0xf]
    %v90 = vld [vmem:[%s4 + $0x3] sm:$0x7]
    %v123 = vunpack.c.l.b16 %v58
    %v124 = vunpack.c.h.b16 %v58
    %v125 = vunpack.c.l.b16 %v59
    %v126 = vunpack.c.l.b16 %v60
    %v127 = vunpack.c.h.b16 %v60
    %v128 = vunpack.c.l.b16 %v61
    %v129 = vunpack.c.l.b16 %v62
    %v130 = vunpack.c.h.b16 %v62
    %v131 = vunpack.c.l.b16 %v63
    %v132 = vunpack.c.l.b16 %v64
    %v133 = vunpack.c.h.b16 %v64
    %v134 = vunpack.c.l.b16 %v65
    %v135 = vunpack.c.l.b16 %v66
    %v136 = vunpack.c.h.b16 %v66
    %v137 = vunpack.c.l.b16 %v67
    %v138 = vunpack.c.l.b16 %v68
    %v139 = vunpack.c.h.b16 %v68
    %v140 = vunpack.c.l.b16 %v69
    %v141 = vunpack.c.l.b16 %v70
    %v142 = vunpack.c.h.b16 %v70
    %v143 = vunpack.c.l.b16 %v71
    %v144 = vunpack.c.l.b16 %v72
    %v145 = vunpack.c.h.b16 %v72
    %v146 = vunpack.c.l.b16 %v73
    %v147 = vunpack.c.l.b16 %v74
    %v148 = vunpack.c.h.b16 %v74
    %v149 = vunpack.c.l.b16 %v75
    %v150 = vunpack.c.l.b16 %v76
    %v151 = vunpack.c.h.b16 %v76
    %v152 = vunpack.c.l.b16 %v77
    %v153 = vunpack.c.l.b16 %v78
    %v154 = vunpack.c.h.b16 %v78
    %v155 = vunpack.c.l.b16 %v79
    %v156 = vunpack.c.l.b16 %v80
    %v157 = vunpack.c.h.b16 %v80
    %v158 = vunpack.c.l.b16 %v81
    %v159 = vunpack.c.l.b16 %v82
    %v160 = vunpack.c.h.b16 %v82
    %v161 = vunpack.c.l.b16 %v83
    %v162 = vunpack.c.l.b16 %v84
    %v163 = vunpack.c.h.b16 %v84
    %v164 = vunpack.c.l.b16 %v85
    %v165 = vunpack.c.l.b16 %v86
    %v166 = vunpack.c.h.b16 %v86
    %v167 = vunpack.c.l.b16 %v87
    %v168 = vunpack.c.l.b16 %v88
    %v169 = vunpack.c.h.b16 %v88
    %v170 = vunpack.c.l.b16 %v89
    %v171 = vpack.c.b16 %v126, %v123
    %v172 = vpack.c.b16 %v127, %v124
    %v173 = vpack.c.b16 %v128, %v125
    %v174 = vpack.c.b16 %v132, %v129
    %v175 = vpack.c.b16 %v133, %v130
    %v176 = vpack.c.b16 %v134, %v131
    %v177 = vpack.c.b16 %v138, %v135
    %v178 = vpack.c.b16 %v139, %v136
    %v179 = vpack.c.b16 %v140, %v137
    %v180 = vpack.c.b16 %v144, %v141
    %v181 = vpack.c.b16 %v145, %v142
    %v182 = vpack.c.b16 %v146, %v143
    %v183 = vpack.c.b16 %v150, %v147
    %v184 = vpack.c.b16 %v151, %v148
    %v185 = vpack.c.b16 %v152, %v149
    %v186 = vpack.c.b16 %v156, %v153
    %v187 = vpack.c.b16 %v157, %v154
    %v188 = vpack.c.b16 %v158, %v155
    %v189 = vpack.c.b16 %v162, %v159
    %v190 = vpack.c.b16 %v163, %v160
    %v191 = vpack.c.b16 %v164, %v161
    %v192 = vpack.c.b16 %v168, %v165
    %v193 = vpack.c.b16 %v169, %v166
    %v194 = vpack.c.b16 %v170, %v167
    %v220 = vlaneseq
    %v221 = vshrl.u32 %v220, 7
    %v222 = vsub.s32 0, %v221
    %v223 = vrot.slane %v90, %v222
    %v224 = vlaneseq
    %v225 = vshrl.u32 %v224, 7
    %v226 = vsub.s32 1, %v225
    %v227 = vrot.slane %v90, %v226
    %v228 = vlaneseq
    %v229 = vshrl.u32 %v228, 7
    %v230 = vsub.s32 2, %v229
    %v231 = vrot.slane %v90, %v230
    %235 = vmatprep.subr.bf16.mxu0 %v193
    %236 = vmatpush1.bf16.msra.mxu0 %v192
    %237 = vmatprep.subr.bf16.mxu0 %v190
    %238 = vmatpush1.bf16.msra.mxu0 %v189
    %239 = vmatprep.subr.bf16.mxu0 %v187
    %240 = vmatpush1.bf16.msra.mxu0 %v186
    %241 = vmatprep.subr.bf16.mxu0 %v184
    %242 = vmatpush1.bf16.msra.mxu0 %v183
    %243 = vmatprep.subr.bf16.mxu0 %v181
    %244 = vmatpush1.bf16.msra.mxu0 %v180
    %245 = vmatprep.subr.bf16.mxu0 %v178
    %246 = vmatpush1.bf16.msra.mxu0 %v177
    %247 = vmatprep.subr.bf16.mxu0 %v175
    %248 = vmatpush1.bf16.msra.mxu0 %v174
    %249 = vmatprep.subr.bf16.mxu0 %v172
    %250 = vmatpush1.bf16.msra.mxu0 %v171
    %251 = vmatprep.subr.bf16.mxu0 0
    %252 = vmatpush2.bf16.msra.mxu0 0
    %253 = vmatprep.subr.bf16.mxu0 0
    %254 = vmatpush2.bf16.msra.mxu0 0
    %255 = vmatprep.subr.bf16.mxu0 0
    %256 = vmatpush2.bf16.msra.mxu0 0
    %257 = vmatprep.subr.bf16.mxu0 0
    %258 = vmatpush2.bf16.msra.mxu0 0
    %259 = vmatprep.subr.bf16.mxu0 0
    %260 = vmatpush2.bf16.msra.mxu0 0
    %261 = vmatprep.subr.bf16.mxu0 0
    %262 = vmatpush2.bf16.msra.mxu0 0
    %263 = vmatprep.subr.bf16.mxu0 0
    %264 = vmatpush2.bf16.msra.mxu0 0
    %265 = vmatprep.subr.bf16.mxu0 0
    %266 = vmatpush2.bf16.msra.mxu0 0
    %267 = vmatprep.mubr.bf16.mxu0 0
    %268 = vmatmul.mubr.bf16.gmra.mxu0 %v57
    %v269 = vpop.f32.mrf.mxu0
    %v270 = vadd.f32 %v223, %v269
    %v271 = vpop.f32.mrf.mxu0
    %v272 = vadd.f32 %v227, %v271
    %v273 = vpop.f32.mrf.mxu0
    %v274 = vpop.f32.mrf.mxu0
    %275 = vdwg.mxu0
    %276 = vmatprep.subr.bf16.mxu0 0
    %277 = vmatpush1.bf16.msra.mxu0 %v194
    %278 = vmatprep.subr.bf16.mxu0 0
    %279 = vmatpush1.bf16.msra.mxu0 %v191
    %280 = vmatprep.subr.bf16.mxu0 0
    %281 = vmatpush1.bf16.msra.mxu0 %v188
    %282 = vmatprep.subr.bf16.mxu0 0
    %283 = vmatpush1.bf16.msra.mxu0 %v185
    %284 = vmatprep.subr.bf16.mxu0 0
    %285 = vmatpush1.bf16.msra.mxu0 %v182
    %286 = vmatprep.subr.bf16.mxu0 0
    %287 = vmatpush1.bf16.msra.mxu0 %v179
    %288 = vmatprep.subr.bf16.mxu0 0
    %289 = vmatpush1.bf16.msra.mxu0 %v176
    %290 = vmatprep.subr.bf16.mxu0 0
    %291 = vmatpush1.bf16.msra.mxu0 %v173
    %292 = vmatprep.subr.bf16.mxu0 0
    %293 = vmatpush2.bf16.msra.mxu0 0
    %294 = vmatprep.subr.bf16.mxu0 0
    %295 = vmatpush2.bf16.msra.mxu0 0
    %296 = vmatprep.subr.bf16.mxu0 0
    %297 = vmatpush2.bf16.msra.mxu0 0
    %298 = vmatprep.subr.bf16.mxu0 0
    %299 = vmatpush2.bf16.msra.mxu0 0
    %300 = vmatprep.subr.bf16.mxu0 0
    %301 = vmatpush2.bf16.msra.mxu0 0
    %302 = vmatprep.subr.bf16.mxu0 0
    %303 = vmatpush2.bf16.msra.mxu0 0
    %304 = vmatprep.subr.bf16.mxu0 0
    %305 = vmatpush2.bf16.msra.mxu0 0
    %306 = vmatprep.subr.bf16.mxu0 0
    %307 = vmatpush2.bf16.msra.mxu0 0
    %308 = vmatprep.mubr.bf16.mxu0 0
    %309 = vmatmul.mubr.bf16.gmra.mxu0 %v57
    %v310 = vpop.f32.mrf.mxu0
    %v311 = vadd.f32 %v231, %v310
    %v312 = vpop.f32.mrf.mxu0
    %v313 = vpop.f32.mrf.mxu0
    %v314 = vpop.f32.mrf.mxu0
    %315 = vdwg.mxu0
    %v316 = vadd.f32 %v56, %v270
    %v317 = vmul.f32 %v316, 0.5
    %v318 = vtanh.pop %v317
    %v319 = vadd.f32 %v318, 1.0
    %v320 = vmul.f32 %v319, 0.5
    %v322 = vrot.slane %v56, 1
    %v324 = vadd.f32 %v322, %v272
    %v325 = vmul.f32 %v324, 0.5
    %v326 = vtanh.pop %v325
    %v327 = vadd.f32 %v326, 1.0
    %v328 = vmul.f32 %v327, 0.5
    %v329 = vmul.f32 %v320, %v311
    %v330 = vrot.slane %v56, 2
    %v332 = vadd.f32 %v330, %v329
    %v333 = vtanh.pop %v332
    %v334 = vsub.f32 1.0, %v328
    %v335 = vmul.f32 %v334, %v333
    %v336 = vmul.f32 %v328, %v52
    %v337 = vadd.f32 %v335, %v336
    %338 = vst [vmem:[#allocation9] sm:$0x1] %v337
    %s339 = sld [smem:[#allocation3 + $0x1]]
    %s340 = smul.u32 %s339, 3
    %s341 = scalar_lea.vmem [#allocation4], %s340
    %v342 = vld [vmem:[%s341] sm:$0x7]
    %v343 = vpack.c.bf16 %v337, %v337
    %v344 = vld [vmem:[#allocation7 + $0xc] sm:$0xff]
    %v345 = vld [vmem:[#allocation7 + $0x14] sm:$0xf]
    %v346 = vld [vmem:[#allocation7 + $0x24] sm:$0xff]
    %v347 = vld [vmem:[#allocation7 + $0x2c] sm:$0xf]
    %v348 = vld [vmem:[#allocation7 + $0x3c] sm:$0xff]
    %v349 = vld [vmem:[#allocation7 + $0x44] sm:$0xf]
    %v350 = vld [vmem:[#allocation7 + $0x54] sm:$0xff]
    %v351 = vld [vmem:[#allocation7 + $0x5c] sm:$0xf]
    %v352 = vld [vmem:[#allocation7 + $0x6c] sm:$0xff]
    %v353 = vld [vmem:[#allocation7 + $0x74] sm:$0xf]
    %v354 = vld [vmem:[#allocation7 + $0x84] sm:$0xff]
    %v355 = vld [vmem:[#allocation7 + $0x8c] sm:$0xf]
    %v356 = vld [vmem:[#allocation7 + $0x9c] sm:$0xff]
    %v357 = vld [vmem:[#allocation7 + $0xa4] sm:$0xf]
    %v358 = vld [vmem:[#allocation7 + $0xb4] sm:$0xff]
    %v359 = vld [vmem:[#allocation7 + $0xbc] sm:$0xf]
    %v360 = vld [vmem:[#allocation7 + $0xcc] sm:$0xff]
    %v361 = vld [vmem:[#allocation7 + $0xd4] sm:$0xf]
    %v362 = vld [vmem:[#allocation7 + $0xe4] sm:$0xff]
    %v363 = vld [vmem:[#allocation7 + $0xec] sm:$0xf]
    %v364 = vld [vmem:[#allocation7 + $0xfc] sm:$0xff]
    %v365 = vld [vmem:[#allocation7 + $0x104] sm:$0xf]
    %v366 = vld [vmem:[#allocation7 + $0x114] sm:$0xff]
    %v367 = vld [vmem:[#allocation7 + $0x11c] sm:$0xf]
    %v368 = vld [vmem:[#allocation7 + $0x12c] sm:$0xff]
    %v369 = vld [vmem:[#allocation7 + $0x134] sm:$0xf]
    %v370 = vld [vmem:[#allocation7 + $0x144] sm:$0xff]
    %v371 = vld [vmem:[#allocation7 + $0x14c] sm:$0xf]
    %v372 = vld [vmem:[#allocation7 + $0x15c] sm:$0xff]
    %v373 = vld [vmem:[#allocation7 + $0x164] sm:$0xf]
    %v374 = vld [vmem:[#allocation7 + $0x174] sm:$0xff]
    %v375 = vld [vmem:[#allocation7 + $0x17c] sm:$0xf]
    %v376 = vld [vmem:[%s4 + $0x3] sm:$0x7]
    %v409 = vunpack.c.l.b16 %v344
    %v410 = vunpack.c.h.b16 %v344
    %v411 = vunpack.c.l.b16 %v345
    %v412 = vunpack.c.l.b16 %v346
    %v413 = vunpack.c.h.b16 %v346
    %v414 = vunpack.c.l.b16 %v347
    %v415 = vunpack.c.l.b16 %v348
    %v416 = vunpack.c.h.b16 %v348
    %v417 = vunpack.c.l.b16 %v349
    %v418 = vunpack.c.l.b16 %v350
    %v419 = vunpack.c.h.b16 %v350
    %v420 = vunpack.c.l.b16 %v351
    %v421 = vunpack.c.l.b16 %v352
    %v422 = vunpack.c.h.b16 %v352
    %v423 = vunpack.c.l.b16 %v353
    %v424 = vunpack.c.l.b16 %v354
    %v425 = vunpack.c.h.b16 %v354
    %v426 = vunpack.c.l.b16 %v355
    %v427 = vunpack.c.l.b16 %v356
    %v428 = vunpack.c.h.b16 %v356
    %v429 = vunpack.c.l.b16 %v357
    %v430 = vunpack.c.l.b16 %v358
    %v431 = vunpack.c.h.b16 %v358
    %v432 = vunpack.c.l.b16 %v359
    %v433 = vunpack.c.l.b16 %v360
    %v434 = vunpack.c.h.b16 %v360
    %v435 = vunpack.c.l.b16 %v361
    %v436 = vunpack.c.l.b16 %v362
    %v437 = vunpack.c.h.b16 %v362
    %v438 = vunpack.c.l.b16 %v363
    %v439 = vunpack.c.l.b16 %v364
    %v440 = vunpack.c.h.b16 %v364
    %v441 = vunpack.c.l.b16 %v365
    %v442 = vunpack.c.l.b16 %v366
    %v443 = vunpack.c.h.b16 %v366
    %v444 = vunpack.c.l.b16 %v367
    %v445 = vunpack.c.l.b16 %v368
    %v446 = vunpack.c.h.b16 %v368
    %v447 = vunpack.c.l.b16 %v369
    %v448 = vunpack.c.l.b16 %v370
    %v449 = vunpack.c.h.b16 %v370
    %v450 = vunpack.c.l.b16 %v371
    %v451 = vunpack.c.l.b16 %v372
    %v452 = vunpack.c.h.b16 %v372
    %v453 = vunpack.c.l.b16 %v373
    %v454 = vunpack.c.l.b16 %v374
    %v455 = vunpack.c.h.b16 %v374
    %v456 = vunpack.c.l.b16 %v375
    %v457 = vpack.c.b16 %v412, %v409
    %v458 = vpack.c.b16 %v413, %v410
    %v459 = vpack.c.b16 %v414, %v411
    %v460 = vpack.c.b16 %v418, %v415
    %v461 = vpack.c.b16 %v419, %v416
    %v462 = vpack.c.b16 %v420, %v417
    %v463 = vpack.c.b16 %v424, %v421
    %v464 = vpack.c.b16 %v425, %v422
    %v465 = vpack.c.b16 %v426, %v423
    %v466 = vpack.c.b16 %v430, %v427
    %v467 = vpack.c.b16 %v431, %v428
    %v468 = vpack.c.b16 %v432, %v429
    %v469 = vpack.c.b16 %v436, %v433
    %v470 = vpack.c.b16 %v437, %v434
    %v471 = vpack.c.b16 %v438, %v435
    %v472 = vpack.c.b16 %v442, %v439
    %v473 = vpack.c.b16 %v443, %v440
    %v474 = vpack.c.b16 %v444, %v441
    %v475 = vpack.c.b16 %v448, %v445
    %v476 = vpack.c.b16 %v449, %v446
    %v477 = vpack.c.b16 %v450, %v447
    %v478 = vpack.c.b16 %v454, %v451
    %v479 = vpack.c.b16 %v455, %v452
    %v480 = vpack.c.b16 %v456, %v453
    %v506 = vlaneseq
    %v507 = vshrl.u32 %v506, 7
    %v508 = vsub.s32 0, %v507
    %v509 = vrot.slane %v376, %v508
    %v510 = vlaneseq
    %v511 = vshrl.u32 %v510, 7
    %v512 = vsub.s32 1, %v511
    %v513 = vrot.slane %v376, %v512
    %v514 = vlaneseq
    %v515 = vshrl.u32 %v514, 7
    %v516 = vsub.s32 2, %v515
    %v517 = vrot.slane %v376, %v516
    %521 = vmatprep.subr.bf16.mxu0 %v479
    %522 = vmatpush1.bf16.msra.mxu0 %v478
    %523 = vmatprep.subr.bf16.mxu0 %v476
    %524 = vmatpush1.bf16.msra.mxu0 %v475
    %525 = vmatprep.subr.bf16.mxu0 %v473
    %526 = vmatpush1.bf16.msra.mxu0 %v472
    %527 = vmatprep.subr.bf16.mxu0 %v470
    %528 = vmatpush1.bf16.msra.mxu0 %v469
    %529 = vmatprep.subr.bf16.mxu0 %v467
    %530 = vmatpush1.bf16.msra.mxu0 %v466
    %531 = vmatprep.subr.bf16.mxu0 %v464
    %532 = vmatpush1.bf16.msra.mxu0 %v463
    %533 = vmatprep.subr.bf16.mxu0 %v461
    %534 = vmatpush1.bf16.msra.mxu0 %v460
    %535 = vmatprep.subr.bf16.mxu0 %v458
    %536 = vmatpush1.bf16.msra.mxu0 %v457
    %537 = vmatprep.subr.bf16.mxu0 0
    %538 = vmatpush2.bf16.msra.mxu0 0
    %539 = vmatprep.subr.bf16.mxu0 0
    %540 = vmatpush2.bf16.msra.mxu0 0
    %541 = vmatprep.subr.bf16.mxu0 0
    %542 = vmatpush2.bf16.msra.mxu0 0
    %543 = vmatprep.subr.bf16.mxu0 0
    %544 = vmatpush2.bf16.msra.mxu0 0
    %545 = vmatprep.subr.bf16.mxu0 0
    %546 = vmatpush2.bf16.msra.mxu0 0
    %547 = vmatprep.subr.bf16.mxu0 0
    %548 = vmatpush2.bf16.msra.mxu0 0
    %549 = vmatprep.subr.bf16.mxu0 0
    %550 = vmatpush2.bf16.msra.mxu0 0
    %551 = vmatprep.subr.bf16.mxu0 0
    %552 = vmatpush2.bf16.msra.mxu0 0
    %553 = vmatprep.mubr.bf16.mxu0 0
    %554 = vmatmul.mubr.bf16.gmra.mxu0 %v343
    %v555 = vpop.f32.mrf.mxu0
    %v556 = vadd.f32 %v509, %v555
    %v557 = vpop.f32.mrf.mxu0
    %v558 = vadd.f32 %v513, %v557
    %v559 = vpop.f32.mrf.mxu0
    %v560 = vpop.f32.mrf.mxu0
    %561 = vdwg.mxu0
    %562 = vmatprep.subr.bf16.mxu0 0
    %563 = vmatpush1.bf16.msra.mxu0 %v480
    %564 = vmatprep.subr.bf16.mxu0 0
    %565 = vmatpush1.bf16.msra.mxu0 %v477
    %566 = vmatprep.subr.bf16.mxu0 0
    %567 = vmatpush1.bf16.msra.mxu0 %v474
    %568 = vmatprep.subr.bf16.mxu0 0
    %569 = vmatpush1.bf16.msra.mxu0 %v471
    %570 = vmatprep.subr.bf16.mxu0 0
    %571 = vmatpush1.bf16.msra.mxu0 %v468
    %572 = vmatprep.subr.bf16.mxu0 0
    %573 = vmatpush1.bf16.msra.mxu0 %v465
    %574 = vmatprep.subr.bf16.mxu0 0
    %575 = vmatpush1.bf16.msra.mxu0 %v462
    %576 = vmatprep.subr.bf16.mxu0 0
    %577 = vmatpush1.bf16.msra.mxu0 %v459
    %578 = vmatprep.subr.bf16.mxu0 0
    %579 = vmatpush2.bf16.msra.mxu0 0
    %580 = vmatprep.subr.bf16.mxu0 0
    %581 = vmatpush2.bf16.msra.mxu0 0
    %582 = vmatprep.subr.bf16.mxu0 0
    %583 = vmatpush2.bf16.msra.mxu0 0
    %584 = vmatprep.subr.bf16.mxu0 0
    %585 = vmatpush2.bf16.msra.mxu0 0
    %586 = vmatprep.subr.bf16.mxu0 0
    %587 = vmatpush2.bf16.msra.mxu0 0
    %588 = vmatprep.subr.bf16.mxu0 0
    %589 = vmatpush2.bf16.msra.mxu0 0
    %590 = vmatprep.subr.bf16.mxu0 0
    %591 = vmatpush2.bf16.msra.mxu0 0
    %592 = vmatprep.subr.bf16.mxu0 0
    %593 = vmatpush2.bf16.msra.mxu0 0
    %594 = vmatprep.mubr.bf16.mxu0 0
    %595 = vmatmul.mubr.bf16.gmra.mxu0 %v343
    %v596 = vpop.f32.mrf.mxu0
    %v597 = vadd.f32 %v517, %v596
    %v598 = vpop.f32.mrf.mxu0
    %v599 = vpop.f32.mrf.mxu0
    %v600 = vpop.f32.mrf.mxu0
    %601 = vdwg.mxu0
    %v602 = vadd.f32 %v342, %v556
    %v603 = vmul.f32 %v602, 0.5
    %v604 = vtanh.pop %v603
    %v605 = vadd.f32 %v604, 1.0
    %v606 = vmul.f32 %v605, 0.5
    %v608 = vrot.slane %v342, 1
    %v610 = vadd.f32 %v608, %v558
    %v611 = vmul.f32 %v610, 0.5
    %v612 = vtanh.pop %v611
    %v613 = vadd.f32 %v612, 1.0
    %v614 = vmul.f32 %v613, 0.5
    %v615 = vmul.f32 %v606, %v597
    %v616 = vrot.slane %v342, 2
    %v618 = vadd.f32 %v616, %v615
    %v619 = vtanh.pop %v618
    %v620 = vsub.f32 1.0, %v614
    %v621 = vmul.f32 %v620, %v619
    %v622 = vmul.f32 %v614, %v337
    %v623 = vadd.f32 %v621, %v622
    %s624 = scalar_lea.vmem [#allocation9], 1
    %625 = vst [vmem:[%s624] sm:$0x1] %v623
    %s626 = sld [smem:[#allocation3 + $0x2]]
    %s627 = smul.u32 %s626, 3
    %s628 = scalar_lea.vmem [#allocation4], %s627
    %v629 = vld [vmem:[%s628] sm:$0x7]
    %v630 = vpack.c.bf16 %v623, %v623
    %v631 = vld [vmem:[#allocation7 + $0xc] sm:$0xff]
    %v632 = vld [vmem:[#allocation7 + $0x14] sm:$0xf]
    %v633 = vld [vmem:[#allocation7 + $0x24] sm:$0xff]
    %v634 = vld [vmem:[#allocation7 + $0x2c] sm:$0xf]
    %v635 = vld [vmem:[#allocation7 + $0x3c] sm:$0xff]
    %v636 = vld [vmem:[#allocation7 + $0x44] sm:$0xf]
    %v637 = vld [vmem:[#allocation7 + $0x54] sm:$0xff]
    %v638 = vld [vmem:[#allocation7 + $0x5c] sm:$0xf]
    %v639 = vld [vmem:[#allocation7 + $0x6c] sm:$0xff]
    %v640 = vld [vmem:[#allocation7 + $0x74] sm:$0xf]
    %v641 = vld [vmem:[#allocation7 + $0x84] sm:$0xff]
    %v642 = vld [vmem:[#allocation7 + $0x8c] sm:$0xf]
    %v643 = vld [vmem:[#allocation7 + $0x9c] sm:$0xff]
    %v644 = vld [vmem:[#allocation7 + $0xa4] sm:$0xf]
    %v645 = vld [vmem:[#allocation7 + $0xb4] sm:$0xff]
    %v646 = vld [vmem:[#allocation7 + $0xbc] sm:$0xf]
    %v647 = vld [vmem:[#allocation7 + $0xcc] sm:$0xff]
    %v648 = vld [vmem:[#allocation7 + $0xd4] sm:$0xf]
    %v649 = vld [vmem:[#allocation7 + $0xe4] sm:$0xff]
    %v650 = vld [vmem:[#allocation7 + $0xec] sm:$0xf]
    %v651 = vld [vmem:[#allocation7 + $0xfc] sm:$0xff]
    %v652 = vld [vmem:[#allocation7 + $0x104] sm:$0xf]
    %v653 = vld [vmem:[#allocation7 + $0x114] sm:$0xff]
    %v654 = vld [vmem:[#allocation7 + $0x11c] sm:$0xf]
    %v655 = vld [vmem:[#allocation7 + $0x12c] sm:$0xff]
    %v656 = vld [vmem:[#allocation7 + $0x134] sm:$0xf]
    %v657 = vld [vmem:[#allocation7 + $0x144] sm:$0xff]
    %v658 = vld [vmem:[#allocation7 + $0x14c] sm:$0xf]
    %v659 = vld [vmem:[#allocation7 + $0x15c] sm:$0xff]
    %v660 = vld [vmem:[#allocation7 + $0x164] sm:$0xf]
    %v661 = vld [vmem:[#allocation7 + $0x174] sm:$0xff]
    %v662 = vld [vmem:[#allocation7 + $0x17c] sm:$0xf]
    %v663 = vld [vmem:[%s4 + $0x3] sm:$0x7]
    %v696 = vunpack.c.l.b16 %v631
    %v697 = vunpack.c.h.b16 %v631
    %v698 = vunpack.c.l.b16 %v632
    %v699 = vunpack.c.l.b16 %v633
    %v700 = vunpack.c.h.b16 %v633
    %v701 = vunpack.c.l.b16 %v634
    %v702 = vunpack.c.l.b16 %v635
    %v703 = vunpack.c.h.b16 %v635
    %v704 = vunpack.c.l.b16 %v636
    %v705 = vunpack.c.l.b16 %v637
    %v706 = vunpack.c.h.b16 %v637
    %v707 = vunpack.c.l.b16 %v638
    %v708 = vunpack.c.l.b16 %v639
    %v709 = vunpack.c.h.b16 %v639
    %v710 = vunpack.c.l.b16 %v640
    %v711 = vunpack.c.l.b16 %v641
    %v712 = vunpack.c.h.b16 %v641
    %v713 = vunpack.c.l.b16 %v642
    %v714 = vunpack.c.l.b16 %v643
    %v715 = vunpack.c.h.b16 %v643
    %v716 = vunpack.c.l.b16 %v644
    %v717 = vunpack.c.l.b16 %v645
    %v718 = vunpack.c.h.b16 %v645
    %v719 = vunpack.c.l.b16 %v646
    %v720 = vunpack.c.l.b16 %v647
    %v721 = vunpack.c.h.b16 %v647
    %v722 = vunpack.c.l.b16 %v648
    %v723 = vunpack.c.l.b16 %v649
    %v724 = vunpack.c.h.b16 %v649
    %v725 = vunpack.c.l.b16 %v650
    %v726 = vunpack.c.l.b16 %v651
    %v727 = vunpack.c.h.b16 %v651
    %v728 = vunpack.c.l.b16 %v652
    %v729 = vunpack.c.l.b16 %v653
    %v730 = vunpack.c.h.b16 %v653
    %v731 = vunpack.c.l.b16 %v654
    %v732 = vunpack.c.l.b16 %v655
    %v733 = vunpack.c.h.b16 %v655
    %v734 = vunpack.c.l.b16 %v656
    %v735 = vunpack.c.l.b16 %v657
    %v736 = vunpack.c.h.b16 %v657
    %v737 = vunpack.c.l.b16 %v658
    %v738 = vunpack.c.l.b16 %v659
    %v739 = vunpack.c.h.b16 %v659
    %v740 = vunpack.c.l.b16 %v660
    %v741 = vunpack.c.l.b16 %v661
    %v742 = vunpack.c.h.b16 %v661
    %v743 = vunpack.c.l.b16 %v662
    %v744 = vpack.c.b16 %v699, %v696
    %v745 = vpack.c.b16 %v700, %v697
    %v746 = vpack.c.b16 %v701, %v698
    %v747 = vpack.c.b16 %v705, %v702
    %v748 = vpack.c.b16 %v706, %v703
    %v749 = vpack.c.b16 %v707, %v704
    %v750 = vpack.c.b16 %v711, %v708
    %v751 = vpack.c.b16 %v712, %v709
    %v752 = vpack.c.b16 %v713, %v710
    %v753 = vpack.c.b16 %v717, %v714
    %v754 = vpack.c.b16 %v718, %v715
    %v755 = vpack.c.b16 %v719, %v716
    %v756 = vpack.c.b16 %v723, %v720
    %v757 = vpack.c.b16 %v724, %v721
    %v758 = vpack.c.b16 %v725, %v722
    %v759 = vpack.c.b16 %v729, %v726
    %v760 = vpack.c.b16 %v730, %v727
    %v761 = vpack.c.b16 %v731, %v728
    %v762 = vpack.c.b16 %v735, %v732
    %v763 = vpack.c.b16 %v736, %v733
    %v764 = vpack.c.b16 %v737, %v734
    %v765 = vpack.c.b16 %v741, %v738
    %v766 = vpack.c.b16 %v742, %v739
    %v767 = vpack.c.b16 %v743, %v740
    %v793 = vlaneseq
    %v794 = vshrl.u32 %v793, 7
    %v795 = vsub.s32 0, %v794
    %v796 = vrot.slane %v663, %v795
    %v797 = vlaneseq
    %v798 = vshrl.u32 %v797, 7
    %v799 = vsub.s32 1, %v798
    %v800 = vrot.slane %v663, %v799
    %v801 = vlaneseq
    %v802 = vshrl.u32 %v801, 7
    %v803 = vsub.s32 2, %v802
    %v804 = vrot.slane %v663, %v803
    %808 = vmatprep.subr.bf16.mxu0 %v766
    %809 = vmatpush1.bf16.msra.mxu0 %v765
    %810 = vmatprep.subr.bf16.mxu0 %v763
    %811 = vmatpush1.bf16.msra.mxu0 %v762
    %812 = vmatprep.subr.bf16.mxu0 %v760
    %813 = vmatpush1.bf16.msra.mxu0 %v759
    %814 = vmatprep.subr.bf16.mxu0 %v757
    %815 = vmatpush1.bf16.msra.mxu0 %v756
    %816 = vmatprep.subr.bf16.mxu0 %v754
    %817 = vmatpush1.bf16.msra.mxu0 %v753
    %818 = vmatprep.subr.bf16.mxu0 %v751
    %819 = vmatpush1.bf16.msra.mxu0 %v750
    %820 = vmatprep.subr.bf16.mxu0 %v748
    %821 = vmatpush1.bf16.msra.mxu0 %v747
    %822 = vmatprep.subr.bf16.mxu0 %v745
    %823 = vmatpush1.bf16.msra.mxu0 %v744
    %824 = vmatprep.subr.bf16.mxu0 0
    %825 = vmatpush2.bf16.msra.mxu0 0
    %826 = vmatprep.subr.bf16.mxu0 0
    %827 = vmatpush2.bf16.msra.mxu0 0
    %828 = vmatprep.subr.bf16.mxu0 0
    %829 = vmatpush2.bf16.msra.mxu0 0
    %830 = vmatprep.subr.bf16.mxu0 0
    %831 = vmatpush2.bf16.msra.mxu0 0
    %832 = vmatprep.subr.bf16.mxu0 0
    %833 = vmatpush2.bf16.msra.mxu0 0
    %834 = vmatprep.subr.bf16.mxu0 0
    %835 = vmatpush2.bf16.msra.mxu0 0
    %836 = vmatprep.subr.bf16.mxu0 0
    %837 = vmatpush2.bf16.msra.mxu0 0
    %838 = vmatprep.subr.bf16.mxu0 0
    %839 = vmatpush2.bf16.msra.mxu0 0
    %840 = vmatprep.mubr.bf16.mxu0 0
    %841 = vmatmul.mubr.bf16.gmra.mxu0 %v630
    %v842 = vpop.f32.mrf.mxu0
    %v843 = vadd.f32 %v796, %v842
    %v844 = vpop.f32.mrf.mxu0
    %v845 = vadd.f32 %v800, %v844
    %v846 = vpop.f32.mrf.mxu0
    %v847 = vpop.f32.mrf.mxu0
    %848 = vdwg.mxu0
    %849 = vmatprep.subr.bf16.mxu0 0
    %850 = vmatpush1.bf16.msra.mxu0 %v767
    %851 = vmatprep.subr.bf16.mxu0 0
    %852 = vmatpush1.bf16.msra.mxu0 %v764
    %853 = vmatprep.subr.bf16.mxu0 0
    %854 = vmatpush1.bf16.msra.mxu0 %v761
    %855 = vmatprep.subr.bf16.mxu0 0
    %856 = vmatpush1.bf16.msra.mxu0 %v758
    %857 = vmatprep.subr.bf16.mxu0 0
    %858 = vmatpush1.bf16.msra.mxu0 %v755
    %859 = vmatprep.subr.bf16.mxu0 0
    %860 = vmatpush1.bf16.msra.mxu0 %v752
    %861 = vmatprep.subr.bf16.mxu0 0
    %862 = vmatpush1.bf16.msra.mxu0 %v749
    %863 = vmatprep.subr.bf16.mxu0 0
    %864 = vmatpush1.bf16.msra.mxu0 %v746
    %865 = vmatprep.subr.bf16.mxu0 0
    %866 = vmatpush2.bf16.msra.mxu0 0
    %867 = vmatprep.subr.bf16.mxu0 0
    %868 = vmatpush2.bf16.msra.mxu0 0
    %869 = vmatprep.subr.bf16.mxu0 0
    %870 = vmatpush2.bf16.msra.mxu0 0
    %871 = vmatprep.subr.bf16.mxu0 0
    %872 = vmatpush2.bf16.msra.mxu0 0
    %873 = vmatprep.subr.bf16.mxu0 0
    %874 = vmatpush2.bf16.msra.mxu0 0
    %875 = vmatprep.subr.bf16.mxu0 0
    %876 = vmatpush2.bf16.msra.mxu0 0
    %877 = vmatprep.subr.bf16.mxu0 0
    %878 = vmatpush2.bf16.msra.mxu0 0
    %879 = vmatprep.subr.bf16.mxu0 0
    %880 = vmatpush2.bf16.msra.mxu0 0
    %881 = vmatprep.mubr.bf16.mxu0 0
    %882 = vmatmul.mubr.bf16.gmra.mxu0 %v630
    %v883 = vpop.f32.mrf.mxu0
    %v884 = vadd.f32 %v804, %v883
    %v885 = vpop.f32.mrf.mxu0
    %v886 = vpop.f32.mrf.mxu0
    %v887 = vpop.f32.mrf.mxu0
    %888 = vdwg.mxu0
    %v889 = vadd.f32 %v629, %v843
    %v890 = vmul.f32 %v889, 0.5
    %v891 = vtanh.pop %v890
    %v892 = vadd.f32 %v891, 1.0
    %v893 = vmul.f32 %v892, 0.5
    %v895 = vrot.slane %v629, 1
    %v897 = vadd.f32 %v895, %v845
    %v898 = vmul.f32 %v897, 0.5
    %v899 = vtanh.pop %v898
    %v900 = vadd.f32 %v899, 1.0
    %v901 = vmul.f32 %v900, 0.5
    %v902 = vmul.f32 %v893, %v884
    %v903 = vrot.slane %v629, 2
    %v905 = vadd.f32 %v903, %v902
    %v906 = vtanh.pop %v905
    %v907 = vsub.f32 1.0, %v901
    %v908 = vmul.f32 %v907, %v906
    %v909 = vmul.f32 %v901, %v623
    %v910 = vadd.f32 %v908, %v909
    %s911 = scalar_lea.vmem [#allocation9], 2
    %912 = vst [vmem:[%s911] sm:$0x1] %v910
    %s913 = sld [smem:[#allocation3 + $0x3]]
    %s914 = smul.u32 %s913, 3
    %s915 = scalar_lea.vmem [#allocation4], %s914
    %v916 = vld [vmem:[%s915] sm:$0x7]
    %v917 = vpack.c.bf16 %v910, %v910
    %v918 = vld [vmem:[#allocation7 + $0xc] sm:$0xff]
    %v919 = vld [vmem:[#allocation7 + $0x14] sm:$0xf]
    %v920 = vld [vmem:[#allocation7 + $0x24] sm:$0xff]
    %v921 = vld [vmem:[#allocation7 + $0x2c] sm:$0xf]
    %v922 = vld [vmem:[#allocation7 + $0x3c] sm:$0xff]
    %v923 = vld [vmem:[#allocation7 + $0x44] sm:$0xf]
    %v924 = vld [vmem:[#allocation7 + $0x54] sm:$0xff]
    %v925 = vld [vmem:[#allocation7 + $0x5c] sm:$0xf]
    %v926 = vld [vmem:[#allocation7 + $0x6c] sm:$0xff]
    %v927 = vld [vmem:[#allocation7 + $0x74] sm:$0xf]
    %v928 = vld [vmem:[#allocation7 + $0x84] sm:$0xff]
    %v929 = vld [vmem:[#allocation7 + $0x8c] sm:$0xf]
    %v930 = vld [vmem:[#allocation7 + $0x9c] sm:$0xff]
    %v931 = vld [vmem:[#allocation7 + $0xa4] sm:$0xf]
    %v932 = vld [vmem:[#allocation7 + $0xb4] sm:$0xff]
    %v933 = vld [vmem:[#allocation7 + $0xbc] sm:$0xf]
    %v934 = vld [vmem:[#allocation7 + $0xcc] sm:$0xff]
    %v935 = vld [vmem:[#allocation7 + $0xd4] sm:$0xf]
    %v936 = vld [vmem:[#allocation7 + $0xe4] sm:$0xff]
    %v937 = vld [vmem:[#allocation7 + $0xec] sm:$0xf]
    %v938 = vld [vmem:[#allocation7 + $0xfc] sm:$0xff]
    %v939 = vld [vmem:[#allocation7 + $0x104] sm:$0xf]
    %v940 = vld [vmem:[#allocation7 + $0x114] sm:$0xff]
    %v941 = vld [vmem:[#allocation7 + $0x11c] sm:$0xf]
    %v942 = vld [vmem:[#allocation7 + $0x12c] sm:$0xff]
    %v943 = vld [vmem:[#allocation7 + $0x134] sm:$0xf]
    %v944 = vld [vmem:[#allocation7 + $0x144] sm:$0xff]
    %v945 = vld [vmem:[#allocation7 + $0x14c] sm:$0xf]
    %v946 = vld [vmem:[#allocation7 + $0x15c] sm:$0xff]
    %v947 = vld [vmem:[#allocation7 + $0x164] sm:$0xf]
    %v948 = vld [vmem:[#allocation7 + $0x174] sm:$0xff]
    %v949 = vld [vmem:[#allocation7 + $0x17c] sm:$0xf]
    %v950 = vld [vmem:[%s4 + $0x3] sm:$0x7]
    %v983 = vunpack.c.l.b16 %v918
    %v984 = vunpack.c.h.b16 %v918
    %v985 = vunpack.c.l.b16 %v919
    %v986 = vunpack.c.l.b16 %v920
    %v987 = vunpack.c.h.b16 %v920
    %v988 = vunpack.c.l.b16 %v921
    %v989 = vunpack.c.l.b16 %v922
    %v990 = vunpack.c.h.b16 %v922
    %v991 = vunpack.c.l.b16 %v923
    %v992 = vunpack.c.l.b16 %v924
    %v993 = vunpack.c.h.b16 %v924
    %v994 = vunpack.c.l.b16 %v925
    %v995 = vunpack.c.l.b16 %v926
    %v996 = vunpack.c.h.b16 %v926
    %v997 = vunpack.c.l.b16 %v927
    %v998 = vunpack.c.l.b16 %v928
    %v999 = vunpack.c.h.b16 %v928
    %v1000 = vunpack.c.l.b16 %v929
    %v1001 = vunpack.c.l.b16 %v930
    %v1002 = vunpack.c.h.b16 %v930
    %v1003 = vunpack.c.l.b16 %v931
    %v1004 = vunpack.c.l.b16 %v932
    %v1005 = vunpack.c.h.b16 %v932
    %v1006 = vunpack.c.l.b16 %v933
    %v1007 = vunpack.c.l.b16 %v934
    %v1008 = vunpack.c.h.b16 %v934
    %v1009 = vunpack.c.l.b16 %v935
    %v1010 = vunpack.c.l.b16 %v936
    %v1011 = vunpack.c.h.b16 %v936
    %v1012 = vunpack.c.l.b16 %v937
    %v1013 = vunpack.c.l.b16 %v938
    %v1014 = vunpack.c.h.b16 %v938
    %v1015 = vunpack.c.l.b16 %v939
    %v1016 = vunpack.c.l.b16 %v940
    %v1017 = vunpack.c.h.b16 %v940
    %v1018 = vunpack.c.l.b16 %v941
    %v1019 = vunpack.c.l.b16 %v942
    %v1020 = vunpack.c.h.b16 %v942
    %v1021 = vunpack.c.l.b16 %v943
    %v1022 = vunpack.c.l.b16 %v944
    %v1023 = vunpack.c.h.b16 %v944
    %v1024 = vunpack.c.l.b16 %v945
    %v1025 = vunpack.c.l.b16 %v946
    %v1026 = vunpack.c.h.b16 %v946
    %v1027 = vunpack.c.l.b16 %v947
    %v1028 = vunpack.c.l.b16 %v948
    %v1029 = vunpack.c.h.b16 %v948
    %v1030 = vunpack.c.l.b16 %v949
    %v1031 = vpack.c.b16 %v986, %v983
    %v1032 = vpack.c.b16 %v987, %v984
    %v1033 = vpack.c.b16 %v988, %v985
    %v1034 = vpack.c.b16 %v992, %v989
    %v1035 = vpack.c.b16 %v993, %v990
    %v1036 = vpack.c.b16 %v994, %v991
    %v1037 = vpack.c.b16 %v998, %v995
    %v1038 = vpack.c.b16 %v999, %v996
    %v1039 = vpack.c.b16 %v1000, %v997
    %v1040 = vpack.c.b16 %v1004, %v1001
    %v1041 = vpack.c.b16 %v1005, %v1002
    %v1042 = vpack.c.b16 %v1006, %v1003
    %v1043 = vpack.c.b16 %v1010, %v1007
    %v1044 = vpack.c.b16 %v1011, %v1008
    %v1045 = vpack.c.b16 %v1012, %v1009
    %v1046 = vpack.c.b16 %v1016, %v1013
    %v1047 = vpack.c.b16 %v1017, %v1014
    %v1048 = vpack.c.b16 %v1018, %v1015
    %v1049 = vpack.c.b16 %v1022, %v1019
    %v1050 = vpack.c.b16 %v1023, %v1020
    %v1051 = vpack.c.b16 %v1024, %v1021
    %v1052 = vpack.c.b16 %v1028, %v1025
    %v1053 = vpack.c.b16 %v1029, %v1026
    %v1054 = vpack.c.b16 %v1030, %v1027
    %v1080 = vlaneseq
    %v1081 = vshrl.u32 %v1080, 7
    %v1082 = vsub.s32 0, %v1081
    %v1083 = vrot.slane %v950, %v1082
    %v1084 = vlaneseq
    %v1085 = vshrl.u32 %v1084, 7
    %v1086 = vsub.s32 1, %v1085
    %v1087 = vrot.slane %v950, %v1086
    %v1088 = vlaneseq
    %v1089 = vshrl.u32 %v1088, 7
    %v1090 = vsub.s32 2, %v1089
    %v1091 = vrot.slane %v950, %v1090
    %1095 = vmatprep.subr.bf16.mxu0 %v1053
    %1096 = vmatpush1.bf16.msra.mxu0 %v1052
    %1097 = vmatprep.subr.bf16.mxu0 %v1050
    %1098 = vmatpush1.bf16.msra.mxu0 %v1049
    %1099 = vmatprep.subr.bf16.mxu0 %v1047
    %1100 = vmatpush1.bf16.msra.mxu0 %v1046
    %1101 = vmatprep.subr.bf16.mxu0 %v1044
    %1102 = vmatpush1.bf16.msra.mxu0 %v1043
    %1103 = vmatprep.subr.bf16.mxu0 %v1041
    %1104 = vmatpush1.bf16.msra.mxu0 %v1040
    %1105 = vmatprep.subr.bf16.mxu0 %v1038
    %1106 = vmatpush1.bf16.msra.mxu0 %v1037
    %1107 = vmatprep.subr.bf16.mxu0 %v1035
    %1108 = vmatpush1.bf16.msra.mxu0 %v1034
    %1109 = vmatprep.subr.bf16.mxu0 %v1032
    %1110 = vmatpush1.bf16.msra.mxu0 %v1031
    %1111 = vmatprep.subr.bf16.mxu0 0
    %1112 = vmatpush2.bf16.msra.mxu0 0
    %1113 = vmatprep.subr.bf16.mxu0 0
    %1114 = vmatpush2.bf16.msra.mxu0 0
    %1115 = vmatprep.subr.bf16.mxu0 0
    %1116 = vmatpush2.bf16.msra.mxu0 0
    %1117 = vmatprep.subr.bf16.mxu0 0
    %1118 = vmatpush2.bf16.msra.mxu0 0
    %1119 = vmatprep.subr.bf16.mxu0 0
    %1120 = vmatpush2.bf16.msra.mxu0 0
    %1121 = vmatprep.subr.bf16.mxu0 0
    %1122 = vmatpush2.bf16.msra.mxu0 0
    %1123 = vmatprep.subr.bf16.mxu0 0
    %1124 = vmatpush2.bf16.msra.mxu0 0
    %1125 = vmatprep.subr.bf16.mxu0 0
    %1126 = vmatpush2.bf16.msra.mxu0 0
    %1127 = vmatprep.mubr.bf16.mxu0 0
    %1128 = vmatmul.mubr.bf16.gmra.mxu0 %v917
    %v1129 = vpop.f32.mrf.mxu0
    %v1130 = vadd.f32 %v1083, %v1129
    %v1131 = vpop.f32.mrf.mxu0
    %v1132 = vadd.f32 %v1087, %v1131
    %v1133 = vpop.f32.mrf.mxu0
    %v1134 = vpop.f32.mrf.mxu0
    %1135 = vdwg.mxu0
    %1136 = vmatprep.subr.bf16.mxu0 0
    %1137 = vmatpush1.bf16.msra.mxu0 %v1054
    %1138 = vmatprep.subr.bf16.mxu0 0
    %1139 = vmatpush1.bf16.msra.mxu0 %v1051
    %1140 = vmatprep.subr.bf16.mxu0 0
    %1141 = vmatpush1.bf16.msra.mxu0 %v1048
    %1142 = vmatprep.subr.bf16.mxu0 0
    %1143 = vmatpush1.bf16.msra.mxu0 %v1045
    %1144 = vmatprep.subr.bf16.mxu0 0
    %1145 = vmatpush1.bf16.msra.mxu0 %v1042
    %1146 = vmatprep.subr.bf16.mxu0 0
    %1147 = vmatpush1.bf16.msra.mxu0 %v1039
    %1148 = vmatprep.subr.bf16.mxu0 0
    %1149 = vmatpush1.bf16.msra.mxu0 %v1036
    %1150 = vmatprep.subr.bf16.mxu0 0
    %1151 = vmatpush1.bf16.msra.mxu0 %v1033
    %1152 = vmatprep.subr.bf16.mxu0 0
    %1153 = vmatpush2.bf16.msra.mxu0 0
    %1154 = vmatprep.subr.bf16.mxu0 0
    %1155 = vmatpush2.bf16.msra.mxu0 0
    %1156 = vmatprep.subr.bf16.mxu0 0
    %1157 = vmatpush2.bf16.msra.mxu0 0
    %1158 = vmatprep.subr.bf16.mxu0 0
    %1159 = vmatpush2.bf16.msra.mxu0 0
    %1160 = vmatprep.subr.bf16.mxu0 0
    %1161 = vmatpush2.bf16.msra.mxu0 0
    %1162 = vmatprep.subr.bf16.mxu0 0
    %1163 = vmatpush2.bf16.msra.mxu0 0
    %1164 = vmatprep.subr.bf16.mxu0 0
    %1165 = vmatpush2.bf16.msra.mxu0 0
    %1166 = vmatprep.subr.bf16.mxu0 0
    %1167 = vmatpush2.bf16.msra.mxu0 0
    %1168 = vmatprep.mubr.bf16.mxu0 0
    %1169 = vmatmul.mubr.bf16.gmra.mxu0 %v917
    %v1170 = vpop.f32.mrf.mxu0
    %v1171 = vadd.f32 %v1091, %v1170
    %v1172 = vpop.f32.mrf.mxu0
    %v1173 = vpop.f32.mrf.mxu0
    %v1174 = vpop.f32.mrf.mxu0
    %1175 = vdwg.mxu0
    %v1176 = vadd.f32 %v916, %v1130
    %v1177 = vmul.f32 %v1176, 0.5
    %v1178 = vtanh.pop %v1177
    %v1179 = vadd.f32 %v1178, 1.0
    %v1180 = vmul.f32 %v1179, 0.5
    %v1182 = vrot.slane %v916, 1
    %v1184 = vadd.f32 %v1182, %v1132
    %v1185 = vmul.f32 %v1184, 0.5
    %v1186 = vtanh.pop %v1185
    %v1187 = vadd.f32 %v1186, 1.0
    %v1188 = vmul.f32 %v1187, 0.5
    %v1189 = vmul.f32 %v1180, %v1171
    %v1190 = vrot.slane %v916, 2
    %v1192 = vadd.f32 %v1190, %v1189
    %v1193 = vtanh.pop %v1192
    %v1194 = vsub.f32 1.0, %v1188
    %v1195 = vmul.f32 %v1194, %v1193
    %v1196 = vmul.f32 %v1188, %v910
    %v1197 = vadd.f32 %v1195, %v1196
    %s1198 = scalar_lea.vmem [#allocation9], 3
    %1199 = vst [vmem:[%s1198] sm:$0x1] %v1197
    %s1200 = sld [smem:[#allocation3 + $0x4]]
    %s1201 = smul.u32 %s1200, 3
    %s1202 = scalar_lea.vmem [#allocation4], %s1201
    %v1203 = vld [vmem:[%s1202] sm:$0x7]
    %v1204 = vpack.c.bf16 %v1197, %v1197
    %v1205 = vld [vmem:[#allocation7 + $0xc] sm:$0xff]
    %v1206 = vld [vmem:[#allocation7 + $0x14] sm:$0xf]
    %v1207 = vld [vmem:[#allocation7 + $0x24] sm:$0xff]
    %v1208 = vld [vmem:[#allocation7 + $0x2c] sm:$0xf]
    %v1209 = vld [vmem:[#allocation7 + $0x3c] sm:$0xff]
    %v1210 = vld [vmem:[#allocation7 + $0x44] sm:$0xf]
    %v1211 = vld [vmem:[#allocation7 + $0x54] sm:$0xff]
    %v1212 = vld [vmem:[#allocation7 + $0x5c] sm:$0xf]
    %v1213 = vld [vmem:[#allocation7 + $0x6c] sm:$0xff]
    %v1214 = vld [vmem:[#allocation7 + $0x74] sm:$0xf]
    %v1215 = vld [vmem:[#allocation7 + $0x84] sm:$0xff]
    %v1216 = vld [vmem:[#allocation7 + $0x8c] sm:$0xf]
    %v1217 = vld [vmem:[#allocation7 + $0x9c] sm:$0xff]
    %v1218 = vld [vmem:[#allocation7 + $0xa4] sm:$0xf]
    %v1219 = vld [vmem:[#allocation7 + $0xb4] sm:$0xff]
    %v1220 = vld [vmem:[#allocation7 + $0xbc] sm:$0xf]
    %v1221 = vld [vmem:[#allocation7 + $0xcc] sm:$0xff]
    %v1222 = vld [vmem:[#allocation7 + $0xd4] sm:$0xf]
    %v1223 = vld [vmem:[#allocation7 + $0xe4] sm:$0xff]
    %v1224 = vld [vmem:[#allocation7 + $0xec] sm:$0xf]
    %v1225 = vld [vmem:[#allocation7 + $0xfc] sm:$0xff]
    %v1226 = vld [vmem:[#allocation7 + $0x104] sm:$0xf]
    %v1227 = vld [vmem:[#allocation7 + $0x114] sm:$0xff]
    %v1228 = vld [vmem:[#allocation7 + $0x11c] sm:$0xf]
    %v1229 = vld [vmem:[#allocation7 + $0x12c] sm:$0xff]
    %v1230 = vld [vmem:[#allocation7 + $0x134] sm:$0xf]
    %v1231 = vld [vmem:[#allocation7 + $0x144] sm:$0xff]
    %v1232 = vld [vmem:[#allocation7 + $0x14c] sm:$0xf]
    %v1233 = vld [vmem:[#allocation7 + $0x15c] sm:$0xff]
    %v1234 = vld [vmem:[#allocation7 + $0x164] sm:$0xf]
    %v1235 = vld [vmem:[#allocation7 + $0x174] sm:$0xff]
    %v1236 = vld [vmem:[#allocation7 + $0x17c] sm:$0xf]
    %v1237 = vld [vmem:[%s4 + $0x3] sm:$0x7]
    %v1270 = vunpack.c.l.b16 %v1205
    %v1271 = vunpack.c.h.b16 %v1205
    %v1272 = vunpack.c.l.b16 %v1206
    %v1273 = vunpack.c.l.b16 %v1207
    %v1274 = vunpack.c.h.b16 %v1207
    %v1275 = vunpack.c.l.b16 %v1208
    %v1276 = vunpack.c.l.b16 %v1209
    %v1277 = vunpack.c.h.b16 %v1209
    %v1278 = vunpack.c.l.b16 %v1210
    %v1279 = vunpack.c.l.b16 %v1211
    %v1280 = vunpack.c.h.b16 %v1211
    %v1281 = vunpack.c.l.b16 %v1212
    %v1282 = vunpack.c.l.b16 %v1213
    %v1283 = vunpack.c.h.b16 %v1213
    %v1284 = vunpack.c.l.b16 %v1214
    %v1285 = vunpack.c.l.b16 %v1215
    %v1286 = vunpack.c.h.b16 %v1215
    %v1287 = vunpack.c.l.b16 %v1216
    %v1288 = vunpack.c.l.b16 %v1217
    %v1289 = vunpack.c.h.b16 %v1217
    %v1290 = vunpack.c.l.b16 %v1218
    %v1291 = vunpack.c.l.b16 %v1219
    %v1292 = vunpack.c.h.b16 %v1219
    %v1293 = vunpack.c.l.b16 %v1220
    %v1294 = vunpack.c.l.b16 %v1221
    %v1295 = vunpack.c.h.b16 %v1221
    %v1296 = vunpack.c.l.b16 %v1222
    %v1297 = vunpack.c.l.b16 %v1223
    %v1298 = vunpack.c.h.b16 %v1223
    %v1299 = vunpack.c.l.b16 %v1224
    %v1300 = vunpack.c.l.b16 %v1225
    %v1301 = vunpack.c.h.b16 %v1225
    %v1302 = vunpack.c.l.b16 %v1226
    %v1303 = vunpack.c.l.b16 %v1227
    %v1304 = vunpack.c.h.b16 %v1227
    %v1305 = vunpack.c.l.b16 %v1228
    %v1306 = vunpack.c.l.b16 %v1229
    %v1307 = vunpack.c.h.b16 %v1229
    %v1308 = vunpack.c.l.b16 %v1230
    %v1309 = vunpack.c.l.b16 %v1231
    %v1310 = vunpack.c.h.b16 %v1231
    %v1311 = vunpack.c.l.b16 %v1232
    %v1312 = vunpack.c.l.b16 %v1233
    %v1313 = vunpack.c.h.b16 %v1233
    %v1314 = vunpack.c.l.b16 %v1234
    %v1315 = vunpack.c.l.b16 %v1235
    %v1316 = vunpack.c.h.b16 %v1235
    %v1317 = vunpack.c.l.b16 %v1236
    %v1318 = vpack.c.b16 %v1273, %v1270
    %v1319 = vpack.c.b16 %v1274, %v1271
    %v1320 = vpack.c.b16 %v1275, %v1272
    %v1321 = vpack.c.b16 %v1279, %v1276
    %v1322 = vpack.c.b16 %v1280, %v1277
    %v1323 = vpack.c.b16 %v1281, %v1278
    %v1324 = vpack.c.b16 %v1285, %v1282
    %v1325 = vpack.c.b16 %v1286, %v1283
    %v1326 = vpack.c.b16 %v1287, %v1284
    %v1327 = vpack.c.b16 %v1291, %v1288
    %v1328 = vpack.c.b16 %v1292, %v1289
    %v1329 = vpack.c.b16 %v1293, %v1290
    %v1330 = vpack.c.b16 %v1297, %v1294
    %v1331 = vpack.c.b16 %v1298, %v1295
    %v1332 = vpack.c.b16 %v1299, %v1296
    %v1333 = vpack.c.b16 %v1303, %v1300
    %v1334 = vpack.c.b16 %v1304, %v1301
    %v1335 = vpack.c.b16 %v1305, %v1302
    %v1336 = vpack.c.b16 %v1309, %v1306
    %v1337 = vpack.c.b16 %v1310, %v1307
    %v1338 = vpack.c.b16 %v1311, %v1308
    %v1339 = vpack.c.b16 %v1315, %v1312
    %v1340 = vpack.c.b16 %v1316, %v1313
    %v1341 = vpack.c.b16 %v1317, %v1314
    %v1367 = vlaneseq
    %v1368 = vshrl.u32 %v1367, 7
    %v1369 = vsub.s32 0, %v1368
    %v1370 = vrot.slane %v1237, %v1369
    %v1371 = vlaneseq
    %v1372 = vshrl.u32 %v1371, 7
    %v1373 = vsub.s32 1, %v1372
    %v1374 = vrot.slane %v1237, %v1373
    %v1375 = vlaneseq
    %v1376 = vshrl.u32 %v1375, 7
    %v1377 = vsub.s32 2, %v1376
    %v1378 = vrot.slane %v1237, %v1377
    %1382 = vmatprep.subr.bf16.mxu0 %v1340
    %1383 = vmatpush1.bf16.msra.mxu0 %v1339
    %1384 = vmatprep.subr.bf16.mxu0 %v1337
    %1385 = vmatpush1.bf16.msra.mxu0 %v1336
    %1386 = vmatprep.subr.bf16.mxu0 %v1334
    %1387 = vmatpush1.bf16.msra.mxu0 %v1333
    %1388 = vmatprep.subr.bf16.mxu0 %v1331
    %1389 = vmatpush1.bf16.msra.mxu0 %v1330
    %1390 = vmatprep.subr.bf16.mxu0 %v1328
    %1391 = vmatpush1.bf16.msra.mxu0 %v1327
    %1392 = vmatprep.subr.bf16.mxu0 %v1325
    %1393 = vmatpush1.bf16.msra.mxu0 %v1324
    %1394 = vmatprep.subr.bf16.mxu0 %v1322
    %1395 = vmatpush1.bf16.msra.mxu0 %v1321
    %1396 = vmatprep.subr.bf16.mxu0 %v1319
    %1397 = vmatpush1.bf16.msra.mxu0 %v1318
    %1398 = vmatprep.subr.bf16.mxu0 0
    %1399 = vmatpush2.bf16.msra.mxu0 0
    %1400 = vmatprep.subr.bf16.mxu0 0
    %1401 = vmatpush2.bf16.msra.mxu0 0
    %1402 = vmatprep.subr.bf16.mxu0 0
    %1403 = vmatpush2.bf16.msra.mxu0 0
    %1404 = vmatprep.subr.bf16.mxu0 0
    %1405 = vmatpush2.bf16.msra.mxu0 0
    %1406 = vmatprep.subr.bf16.mxu0 0
    %1407 = vmatpush2.bf16.msra.mxu0 0
    %1408 = vmatprep.subr.bf16.mxu0 0
    %1409 = vmatpush2.bf16.msra.mxu0 0
    %1410 = vmatprep.subr.bf16.mxu0 0
    %1411 = vmatpush2.bf16.msra.mxu0 0
    %1412 = vmatprep.subr.bf16.mxu0 0
    %1413 = vmatpush2.bf16.msra.mxu0 0
    %1414 = vmatprep.mubr.bf16.mxu0 0
    %1415 = vmatmul.mubr.bf16.gmra.mxu0 %v1204
    %v1416 = vpop.f32.mrf.mxu0
    %v1417 = vadd.f32 %v1370, %v1416
    %v1418 = vpop.f32.mrf.mxu0
    %v1419 = vadd.f32 %v1374, %v1418
    %v1420 = vpop.f32.mrf.mxu0
    %v1421 = vpop.f32.mrf.mxu0
    %1422 = vdwg.mxu0
    %1423 = vmatprep.subr.bf16.mxu0 0
    %1424 = vmatpush1.bf16.msra.mxu0 %v1341
    %1425 = vmatprep.subr.bf16.mxu0 0
    %1426 = vmatpush1.bf16.msra.mxu0 %v1338
    %1427 = vmatprep.subr.bf16.mxu0 0
    %1428 = vmatpush1.bf16.msra.mxu0 %v1335
    %1429 = vmatprep.subr.bf16.mxu0 0
    %1430 = vmatpush1.bf16.msra.mxu0 %v1332
    %1431 = vmatprep.subr.bf16.mxu0 0
    %1432 = vmatpush1.bf16.msra.mxu0 %v1329
    %1433 = vmatprep.subr.bf16.mxu0 0
    %1434 = vmatpush1.bf16.msra.mxu0 %v1326
    %1435 = vmatprep.subr.bf16.mxu0 0
    %1436 = vmatpush1.bf16.msra.mxu0 %v1323
    %1437 = vmatprep.subr.bf16.mxu0 0
    %1438 = vmatpush1.bf16.msra.mxu0 %v1320
    %1439 = vmatprep.subr.bf16.mxu0 0
    %1440 = vmatpush2.bf16.msra.mxu0 0
    %1441 = vmatprep.subr.bf16.mxu0 0
    %1442 = vmatpush2.bf16.msra.mxu0 0
    %1443 = vmatprep.subr.bf16.mxu0 0
    %1444 = vmatpush2.bf16.msra.mxu0 0
    %1445 = vmatprep.subr.bf16.mxu0 0
    %1446 = vmatpush2.bf16.msra.mxu0 0
    %1447 = vmatprep.subr.bf16.mxu0 0
    %1448 = vmatpush2.bf16.msra.mxu0 0
    %1449 = vmatprep.subr.bf16.mxu0 0
    %1450 = vmatpush2.bf16.msra.mxu0 0
    %1451 = vmatprep.subr.bf16.mxu0 0
    %1452 = vmatpush2.bf16.msra.mxu0 0
    %1453 = vmatprep.subr.bf16.mxu0 0
    %1454 = vmatpush2.bf16.msra.mxu0 0
    %1455 = vmatprep.mubr.bf16.mxu0 0
    %1456 = vmatmul.mubr.bf16.gmra.mxu0 %v1204
    %v1457 = vpop.f32.mrf.mxu0
    %v1458 = vadd.f32 %v1378, %v1457
    %v1459 = vpop.f32.mrf.mxu0
    %v1460 = vpop.f32.mrf.mxu0
    %v1461 = vpop.f32.mrf.mxu0
    %1462 = vdwg.mxu0
    %v1463 = vadd.f32 %v1203, %v1417
    %v1464 = vmul.f32 %v1463, 0.5
    %v1465 = vtanh.pop %v1464
    %v1466 = vadd.f32 %v1465, 1.0
    %v1467 = vmul.f32 %v1466, 0.5
    %v1469 = vrot.slane %v1203, 1
    %v1471 = vadd.f32 %v1469, %v1419
    %v1472 = vmul.f32 %v1471, 0.5
    %v1473 = vtanh.pop %v1472
    %v1474 = vadd.f32 %v1473, 1.0
    %v1475 = vmul.f32 %v1474, 0.5
    %v1476 = vmul.f32 %v1467, %v1458
    %v1477 = vrot.slane %v1203, 2
    %v1479 = vadd.f32 %v1477, %v1476
    %v1480 = vtanh.pop %v1479
    %v1481 = vsub.f32 1.0, %v1475
    %v1482 = vmul.f32 %v1481, %v1480
    %v1483 = vmul.f32 %v1475, %v1197
    %v1484 = vadd.f32 %v1482, %v1483
    %s1485 = scalar_lea.vmem [#allocation9], 4
    %1486 = vst [vmem:[%s1485] sm:$0x1] %v1484
    %s1487 = sld [smem:[#allocation3 + $0x5]]
    %s1488 = smul.u32 %s1487, 3
    %s1489 = scalar_lea.vmem [#allocation4], %s1488
    %v1490 = vld [vmem:[%s1489] sm:$0x7]
    %v1491 = vpack.c.bf16 %v1484, %v1484
    %v1492 = vld [vmem:[#allocation7 + $0xc] sm:$0xff]
    %v1493 = vld [vmem:[#allocation7 + $0x14] sm:$0xf]
    %v1494 = vld [vmem:[#allocation7 + $0x24] sm:$0xff]
    %v1495 = vld [vmem:[#allocation7 + $0x2c] sm:$0xf]
    %v1496 = vld [vmem:[#allocation7 + $0x3c] sm:$0xff]
    %v1497 = vld [vmem:[#allocation7 + $0x44] sm:$0xf]
    %v1498 = vld [vmem:[#allocation7 + $0x54] sm:$0xff]
    %v1499 = vld [vmem:[#allocation7 + $0x5c] sm:$0xf]
    %v1500 = vld [vmem:[#allocation7 + $0x6c] sm:$0xff]
    %v1501 = vld [vmem:[#allocation7 + $0x74] sm:$0xf]
    %v1502 = vld [vmem:[#allocation7 + $0x84] sm:$0xff]
    %v1503 = vld [vmem:[#allocation7 + $0x8c] sm:$0xf]
    %v1504 = vld [vmem:[#allocation7 + $0x9c] sm:$0xff]
    %v1505 = vld [vmem:[#allocation7 + $0xa4] sm:$0xf]
    %v1506 = vld [vmem:[#allocation7 + $0xb4] sm:$0xff]
    %v1507 = vld [vmem:[#allocation7 + $0xbc] sm:$0xf]
    %v1508 = vld [vmem:[#allocation7 + $0xcc] sm:$0xff]
    %v1509 = vld [vmem:[#allocation7 + $0xd4] sm:$0xf]
    %v1510 = vld [vmem:[#allocation7 + $0xe4] sm:$0xff]
    %v1511 = vld [vmem:[#allocation7 + $0xec] sm:$0xf]
    %v1512 = vld [vmem:[#allocation7 + $0xfc] sm:$0xff]
    %v1513 = vld [vmem:[#allocation7 + $0x104] sm:$0xf]
    %v1514 = vld [vmem:[#allocation7 + $0x114] sm:$0xff]
    %v1515 = vld [vmem:[#allocation7 + $0x11c] sm:$0xf]
    %v1516 = vld [vmem:[#allocation7 + $0x12c] sm:$0xff]
    %v1517 = vld [vmem:[#allocation7 + $0x134] sm:$0xf]
    %v1518 = vld [vmem:[#allocation7 + $0x144] sm:$0xff]
    %v1519 = vld [vmem:[#allocation7 + $0x14c] sm:$0xf]
    %v1520 = vld [vmem:[#allocation7 + $0x15c] sm:$0xff]
    %v1521 = vld [vmem:[#allocation7 + $0x164] sm:$0xf]
    %v1522 = vld [vmem:[#allocation7 + $0x174] sm:$0xff]
    %v1523 = vld [vmem:[#allocation7 + $0x17c] sm:$0xf]
    %v1524 = vld [vmem:[%s4 + $0x3] sm:$0x7]
    %v1557 = vunpack.c.l.b16 %v1492
    %v1558 = vunpack.c.h.b16 %v1492
    %v1559 = vunpack.c.l.b16 %v1493
    %v1560 = vunpack.c.l.b16 %v1494
    %v1561 = vunpack.c.h.b16 %v1494
    %v1562 = vunpack.c.l.b16 %v1495
    %v1563 = vunpack.c.l.b16 %v1496
    %v1564 = vunpack.c.h.b16 %v1496
    %v1565 = vunpack.c.l.b16 %v1497
    %v1566 = vunpack.c.l.b16 %v1498
    %v1567 = vunpack.c.h.b16 %v1498
    %v1568 = vunpack.c.l.b16 %v1499
    %v1569 = vunpack.c.l.b16 %v1500
    %v1570 = vunpack.c.h.b16 %v1500
    %v1571 = vunpack.c.l.b16 %v1501
    %v1572 = vunpack.c.l.b16 %v1502
    %v1573 = vunpack.c.h.b16 %v1502
    %v1574 = vunpack.c.l.b16 %v1503
    %v1575 = vunpack.c.l.b16 %v1504
    %v1576 = vunpack.c.h.b16 %v1504
    %v1577 = vunpack.c.l.b16 %v1505
    %v1578 = vunpack.c.l.b16 %v1506
    %v1579 = vunpack.c.h.b16 %v1506
    %v1580 = vunpack.c.l.b16 %v1507
    %v1581 = vunpack.c.l.b16 %v1508
    %v1582 = vunpack.c.h.b16 %v1508
    %v1583 = vunpack.c.l.b16 %v1509
    %v1584 = vunpack.c.l.b16 %v1510
    %v1585 = vunpack.c.h.b16 %v1510
    %v1586 = vunpack.c.l.b16 %v1511
    %v1587 = vunpack.c.l.b16 %v1512
    %v1588 = vunpack.c.h.b16 %v1512
    %v1589 = vunpack.c.l.b16 %v1513
    %v1590 = vunpack.c.l.b16 %v1514
    %v1591 = vunpack.c.h.b16 %v1514
    %v1592 = vunpack.c.l.b16 %v1515
    %v1593 = vunpack.c.l.b16 %v1516
    %v1594 = vunpack.c.h.b16 %v1516
    %v1595 = vunpack.c.l.b16 %v1517
    %v1596 = vunpack.c.l.b16 %v1518
    %v1597 = vunpack.c.h.b16 %v1518
    %v1598 = vunpack.c.l.b16 %v1519
    %v1599 = vunpack.c.l.b16 %v1520
    %v1600 = vunpack.c.h.b16 %v1520
    %v1601 = vunpack.c.l.b16 %v1521
    %v1602 = vunpack.c.l.b16 %v1522
    %v1603 = vunpack.c.h.b16 %v1522
    %v1604 = vunpack.c.l.b16 %v1523
    %v1605 = vpack.c.b16 %v1560, %v1557
    %v1606 = vpack.c.b16 %v1561, %v1558
    %v1607 = vpack.c.b16 %v1562, %v1559
    %v1608 = vpack.c.b16 %v1566, %v1563
    %v1609 = vpack.c.b16 %v1567, %v1564
    %v1610 = vpack.c.b16 %v1568, %v1565
    %v1611 = vpack.c.b16 %v1572, %v1569
    %v1612 = vpack.c.b16 %v1573, %v1570
    %v1613 = vpack.c.b16 %v1574, %v1571
    %v1614 = vpack.c.b16 %v1578, %v1575
    %v1615 = vpack.c.b16 %v1579, %v1576
    %v1616 = vpack.c.b16 %v1580, %v1577
    %v1617 = vpack.c.b16 %v1584, %v1581
    %v1618 = vpack.c.b16 %v1585, %v1582
    %v1619 = vpack.c.b16 %v1586, %v1583
    %v1620 = vpack.c.b16 %v1590, %v1587
    %v1621 = vpack.c.b16 %v1591, %v1588
    %v1622 = vpack.c.b16 %v1592, %v1589
    %v1623 = vpack.c.b16 %v1596, %v1593
    %v1624 = vpack.c.b16 %v1597, %v1594
    %v1625 = vpack.c.b16 %v1598, %v1595
    %v1626 = vpack.c.b16 %v1602, %v1599
    %v1627 = vpack.c.b16 %v1603, %v1600
    %v1628 = vpack.c.b16 %v1604, %v1601
    %v1654 = vlaneseq
    %v1655 = vshrl.u32 %v1654, 7
    %v1656 = vsub.s32 0, %v1655
    %v1657 = vrot.slane %v1524, %v1656
    %v1658 = vlaneseq
    %v1659 = vshrl.u32 %v1658, 7
    %v1660 = vsub.s32 1, %v1659
    %v1661 = vrot.slane %v1524, %v1660
    %v1662 = vlaneseq
    %v1663 = vshrl.u32 %v1662, 7
    %v1664 = vsub.s32 2, %v1663
    %v1665 = vrot.slane %v1524, %v1664
    %1669 = vmatprep.subr.bf16.mxu0 %v1627
    %1670 = vmatpush1.bf16.msra.mxu0 %v1626
    %1671 = vmatprep.subr.bf16.mxu0 %v1624
    %1672 = vmatpush1.bf16.msra.mxu0 %v1623
    %1673 = vmatprep.subr.bf16.mxu0 %v1621
    %1674 = vmatpush1.bf16.msra.mxu0 %v1620
    %1675 = vmatprep.subr.bf16.mxu0 %v1618
    %1676 = vmatpush1.bf16.msra.mxu0 %v1617
    %1677 = vmatprep.subr.bf16.mxu0 %v1615
    %1678 = vmatpush1.bf16.msra.mxu0 %v1614
    %1679 = vmatprep.subr.bf16.mxu0 %v1612
    %1680 = vmatpush1.bf16.msra.mxu0 %v1611
    %1681 = vmatprep.subr.bf16.mxu0 %v1609
    %1682 = vmatpush1.bf16.msra.mxu0 %v1608
    %1683 = vmatprep.subr.bf16.mxu0 %v1606
    %1684 = vmatpush1.bf16.msra.mxu0 %v1605
    %1685 = vmatprep.subr.bf16.mxu0 0
    %1686 = vmatpush2.bf16.msra.mxu0 0
    %1687 = vmatprep.subr.bf16.mxu0 0
    %1688 = vmatpush2.bf16.msra.mxu0 0
    %1689 = vmatprep.subr.bf16.mxu0 0
    %1690 = vmatpush2.bf16.msra.mxu0 0
    %1691 = vmatprep.subr.bf16.mxu0 0
    %1692 = vmatpush2.bf16.msra.mxu0 0
    %1693 = vmatprep.subr.bf16.mxu0 0
    %1694 = vmatpush2.bf16.msra.mxu0 0
    %1695 = vmatprep.subr.bf16.mxu0 0
    %1696 = vmatpush2.bf16.msra.mxu0 0
    %1697 = vmatprep.subr.bf16.mxu0 0
    %1698 = vmatpush2.bf16.msra.mxu0 0
    %1699 = vmatprep.subr.bf16.mxu0 0
    %1700 = vmatpush2.bf16.msra.mxu0 0
    %1701 = vmatprep.mubr.bf16.mxu0 0
    %1702 = vmatmul.mubr.bf16.gmra.mxu0 %v1491
    %v1703 = vpop.f32.mrf.mxu0
    %v1704 = vadd.f32 %v1657, %v1703
    %v1705 = vpop.f32.mrf.mxu0
    %v1706 = vadd.f32 %v1661, %v1705
    %v1707 = vpop.f32.mrf.mxu0
    %v1708 = vpop.f32.mrf.mxu0
    %1709 = vdwg.mxu0
    %1710 = vmatprep.subr.bf16.mxu0 0
    %1711 = vmatpush1.bf16.msra.mxu0 %v1628
    %1712 = vmatprep.subr.bf16.mxu0 0
    %1713 = vmatpush1.bf16.msra.mxu0 %v1625
    %1714 = vmatprep.subr.bf16.mxu0 0
    %1715 = vmatpush1.bf16.msra.mxu0 %v1622
    %1716 = vmatprep.subr.bf16.mxu0 0
    %1717 = vmatpush1.bf16.msra.mxu0 %v1619
    %1718 = vmatprep.subr.bf16.mxu0 0
    %1719 = vmatpush1.bf16.msra.mxu0 %v1616
    %1720 = vmatprep.subr.bf16.mxu0 0
    %1721 = vmatpush1.bf16.msra.mxu0 %v1613
    %1722 = vmatprep.subr.bf16.mxu0 0
    %1723 = vmatpush1.bf16.msra.mxu0 %v1610
    %1724 = vmatprep.subr.bf16.mxu0 0
    %1725 = vmatpush1.bf16.msra.mxu0 %v1607
    %1726 = vmatprep.subr.bf16.mxu0 0
    %1727 = vmatpush2.bf16.msra.mxu0 0
    %1728 = vmatprep.subr.bf16.mxu0 0
    %1729 = vmatpush2.bf16.msra.mxu0 0
    %1730 = vmatprep.subr.bf16.mxu0 0
    %1731 = vmatpush2.bf16.msra.mxu0 0
    %1732 = vmatprep.subr.bf16.mxu0 0
    %1733 = vmatpush2.bf16.msra.mxu0 0
    %1734 = vmatprep.subr.bf16.mxu0 0
    %1735 = vmatpush2.bf16.msra.mxu0 0
    %1736 = vmatprep.subr.bf16.mxu0 0
    %1737 = vmatpush2.bf16.msra.mxu0 0
    %1738 = vmatprep.subr.bf16.mxu0 0
    %1739 = vmatpush2.bf16.msra.mxu0 0
    %1740 = vmatprep.subr.bf16.mxu0 0
    %1741 = vmatpush2.bf16.msra.mxu0 0
    %1742 = vmatprep.mubr.bf16.mxu0 0
    %1743 = vmatmul.mubr.bf16.gmra.mxu0 %v1491
    %v1744 = vpop.f32.mrf.mxu0
    %v1745 = vadd.f32 %v1665, %v1744
    %v1746 = vpop.f32.mrf.mxu0
    %v1747 = vpop.f32.mrf.mxu0
    %v1748 = vpop.f32.mrf.mxu0
    %1749 = vdwg.mxu0
    %v1750 = vadd.f32 %v1490, %v1704
    %v1751 = vmul.f32 %v1750, 0.5
    %v1752 = vtanh.pop %v1751
    %v1753 = vadd.f32 %v1752, 1.0
    %v1754 = vmul.f32 %v1753, 0.5
    %v1756 = vrot.slane %v1490, 1
    %v1758 = vadd.f32 %v1756, %v1706
    %v1759 = vmul.f32 %v1758, 0.5
    %v1760 = vtanh.pop %v1759
    %v1761 = vadd.f32 %v1760, 1.0
    %v1762 = vmul.f32 %v1761, 0.5
    %v1763 = vmul.f32 %v1754, %v1745
    %v1764 = vrot.slane %v1490, 2
    %v1766 = vadd.f32 %v1764, %v1763
    %v1767 = vtanh.pop %v1766
    %v1768 = vsub.f32 1.0, %v1762
    %v1769 = vmul.f32 %v1768, %v1767
    %v1770 = vmul.f32 %v1762, %v1484
    %v1771 = vadd.f32 %v1769, %v1770
    %s1772 = scalar_lea.vmem [#allocation9], 5
    %1773 = vst [vmem:[%s1772] sm:$0x1] %v1771
    %s1774 = sld [smem:[#allocation3 + $0x6]]
    %s1775 = smul.u32 %s1774, 3
    %s1776 = scalar_lea.vmem [#allocation4], %s1775
    %v1777 = vld [vmem:[%s1776] sm:$0x7]
    %v1778 = vpack.c.bf16 %v1771, %v1771
    %v1779 = vld [vmem:[#allocation7 + $0xc] sm:$0xff]
    %v1780 = vld [vmem:[#allocation7 + $0x14] sm:$0xf]
    %v1781 = vld [vmem:[#allocation7 + $0x24] sm:$0xff]
    %v1782 = vld [vmem:[#allocation7 + $0x2c] sm:$0xf]
    %v1783 = vld [vmem:[#allocation7 + $0x3c] sm:$0xff]
    %v1784 = vld [vmem:[#allocation7 + $0x44] sm:$0xf]
    %v1785 = vld [vmem:[#allocation7 + $0x54] sm:$0xff]
    %v1786 = vld [vmem:[#allocation7 + $0x5c] sm:$0xf]
    %v1787 = vld [vmem:[#allocation7 + $0x6c] sm:$0xff]
    %v1788 = vld [vmem:[#allocation7 + $0x74] sm:$0xf]
    %v1789 = vld [vmem:[#allocation7 + $0x84] sm:$0xff]
    %v1790 = vld [vmem:[#allocation7 + $0x8c] sm:$0xf]
    %v1791 = vld [vmem:[#allocation7 + $0x9c] sm:$0xff]
    %v1792 = vld [vmem:[#allocation7 + $0xa4] sm:$0xf]
    %v1793 = vld [vmem:[#allocation7 + $0xb4] sm:$0xff]
    %v1794 = vld [vmem:[#allocation7 + $0xbc] sm:$0xf]
    %v1795 = vld [vmem:[#allocation7 + $0xcc] sm:$0xff]
    %v1796 = vld [vmem:[#allocation7 + $0xd4] sm:$0xf]
    %v1797 = vld [vmem:[#allocation7 + $0xe4] sm:$0xff]
    %v1798 = vld [vmem:[#allocation7 + $0xec] sm:$0xf]
    %v1799 = vld [vmem:[#allocation7 + $0xfc] sm:$0xff]
    %v1800 = vld [vmem:[#allocation7 + $0x104] sm:$0xf]
    %v1801 = vld [vmem:[#allocation7 + $0x114] sm:$0xff]
    %v1802 = vld [vmem:[#allocation7 + $0x11c] sm:$0xf]
    %v1803 = vld [vmem:[#allocation7 + $0x12c] sm:$0xff]
    %v1804 = vld [vmem:[#allocation7 + $0x134] sm:$0xf]
    %v1805 = vld [vmem:[#allocation7 + $0x144] sm:$0xff]
    %v1806 = vld [vmem:[#allocation7 + $0x14c] sm:$0xf]
    %v1807 = vld [vmem:[#allocation7 + $0x15c] sm:$0xff]
    %v1808 = vld [vmem:[#allocation7 + $0x164] sm:$0xf]
    %v1809 = vld [vmem:[#allocation7 + $0x174] sm:$0xff]
    %v1810 = vld [vmem:[#allocation7 + $0x17c] sm:$0xf]
    %v1811 = vld [vmem:[%s4 + $0x3] sm:$0x7]
    %v1844 = vunpack.c.l.b16 %v1779
    %v1845 = vunpack.c.h.b16 %v1779
    %v1846 = vunpack.c.l.b16 %v1780
    %v1847 = vunpack.c.l.b16 %v1781
    %v1848 = vunpack.c.h.b16 %v1781
    %v1849 = vunpack.c.l.b16 %v1782
    %v1850 = vunpack.c.l.b16 %v1783
    %v1851 = vunpack.c.h.b16 %v1783
    %v1852 = vunpack.c.l.b16 %v1784
    %v1853 = vunpack.c.l.b16 %v1785
    %v1854 = vunpack.c.h.b16 %v1785
    %v1855 = vunpack.c.l.b16 %v1786
    %v1856 = vunpack.c.l.b16 %v1787
    %v1857 = vunpack.c.h.b16 %v1787
    %v1858 = vunpack.c.l.b16 %v1788
    %v1859 = vunpack.c.l.b16 %v1789
    %v1860 = vunpack.c.h.b16 %v1789
    %v1861 = vunpack.c.l.b16 %v1790
    %v1862 = vunpack.c.l.b16 %v1791
    %v1863 = vunpack.c.h.b16 %v1791
    %v1864 = vunpack.c.l.b16 %v1792
    %v1865 = vunpack.c.l.b16 %v1793
    %v1866 = vunpack.c.h.b16 %v1793
    %v1867 = vunpack.c.l.b16 %v1794
    %v1868 = vunpack.c.l.b16 %v1795
    %v1869 = vunpack.c.h.b16 %v1795
    %v1870 = vunpack.c.l.b16 %v1796
    %v1871 = vunpack.c.l.b16 %v1797
    %v1872 = vunpack.c.h.b16 %v1797
    %v1873 = vunpack.c.l.b16 %v1798
    %v1874 = vunpack.c.l.b16 %v1799
    %v1875 = vunpack.c.h.b16 %v1799
    %v1876 = vunpack.c.l.b16 %v1800
    %v1877 = vunpack.c.l.b16 %v1801
    %v1878 = vunpack.c.h.b16 %v1801
    %v1879 = vunpack.c.l.b16 %v1802
    %v1880 = vunpack.c.l.b16 %v1803
    %v1881 = vunpack.c.h.b16 %v1803
    %v1882 = vunpack.c.l.b16 %v1804
    %v1883 = vunpack.c.l.b16 %v1805
    %v1884 = vunpack.c.h.b16 %v1805
    %v1885 = vunpack.c.l.b16 %v1806
    %v1886 = vunpack.c.l.b16 %v1807
    %v1887 = vunpack.c.h.b16 %v1807
    %v1888 = vunpack.c.l.b16 %v1808
    %v1889 = vunpack.c.l.b16 %v1809
    %v1890 = vunpack.c.h.b16 %v1809
    %v1891 = vunpack.c.l.b16 %v1810
    %v1892 = vpack.c.b16 %v1847, %v1844
    %v1893 = vpack.c.b16 %v1848, %v1845
    %v1894 = vpack.c.b16 %v1849, %v1846
    %v1895 = vpack.c.b16 %v1853, %v1850
    %v1896 = vpack.c.b16 %v1854, %v1851
    %v1897 = vpack.c.b16 %v1855, %v1852
    %v1898 = vpack.c.b16 %v1859, %v1856
    %v1899 = vpack.c.b16 %v1860, %v1857
    %v1900 = vpack.c.b16 %v1861, %v1858
    %v1901 = vpack.c.b16 %v1865, %v1862
    %v1902 = vpack.c.b16 %v1866, %v1863
    %v1903 = vpack.c.b16 %v1867, %v1864
    %v1904 = vpack.c.b16 %v1871, %v1868
    %v1905 = vpack.c.b16 %v1872, %v1869
    %v1906 = vpack.c.b16 %v1873, %v1870
    %v1907 = vpack.c.b16 %v1877, %v1874
    %v1908 = vpack.c.b16 %v1878, %v1875
    %v1909 = vpack.c.b16 %v1879, %v1876
    %v1910 = vpack.c.b16 %v1883, %v1880
    %v1911 = vpack.c.b16 %v1884, %v1881
    %v1912 = vpack.c.b16 %v1885, %v1882
    %v1913 = vpack.c.b16 %v1889, %v1886
    %v1914 = vpack.c.b16 %v1890, %v1887
    %v1915 = vpack.c.b16 %v1891, %v1888
    %v1941 = vlaneseq
    %v1942 = vshrl.u32 %v1941, 7
    %v1943 = vsub.s32 0, %v1942
    %v1944 = vrot.slane %v1811, %v1943
    %v1945 = vlaneseq
    %v1946 = vshrl.u32 %v1945, 7
    %v1947 = vsub.s32 1, %v1946
    %v1948 = vrot.slane %v1811, %v1947
    %v1949 = vlaneseq
    %v1950 = vshrl.u32 %v1949, 7
    %v1951 = vsub.s32 2, %v1950
    %v1952 = vrot.slane %v1811, %v1951
    %1956 = vmatprep.subr.bf16.mxu0 %v1914
    %1957 = vmatpush1.bf16.msra.mxu0 %v1913
    %1958 = vmatprep.subr.bf16.mxu0 %v1911
    %1959 = vmatpush1.bf16.msra.mxu0 %v1910
    %1960 = vmatprep.subr.bf16.mxu0 %v1908
    %1961 = vmatpush1.bf16.msra.mxu0 %v1907
    %1962 = vmatprep.subr.bf16.mxu0 %v1905
    %1963 = vmatpush1.bf16.msra.mxu0 %v1904
    %1964 = vmatprep.subr.bf16.mxu0 %v1902
    %1965 = vmatpush1.bf16.msra.mxu0 %v1901
    %1966 = vmatprep.subr.bf16.mxu0 %v1899
    %1967 = vmatpush1.bf16.msra.mxu0 %v1898
    %1968 = vmatprep.subr.bf16.mxu0 %v1896
    %1969 = vmatpush1.bf16.msra.mxu0 %v1895
    %1970 = vmatprep.subr.bf16.mxu0 %v1893
    %1971 = vmatpush1.bf16.msra.mxu0 %v1892
    %1972 = vmatprep.subr.bf16.mxu0 0
    %1973 = vmatpush2.bf16.msra.mxu0 0
    %1974 = vmatprep.subr.bf16.mxu0 0
    %1975 = vmatpush2.bf16.msra.mxu0 0
    %1976 = vmatprep.subr.bf16.mxu0 0
    %1977 = vmatpush2.bf16.msra.mxu0 0
    %1978 = vmatprep.subr.bf16.mxu0 0
    %1979 = vmatpush2.bf16.msra.mxu0 0
    %1980 = vmatprep.subr.bf16.mxu0 0
    %1981 = vmatpush2.bf16.msra.mxu0 0
    %1982 = vmatprep.subr.bf16.mxu0 0
    %1983 = vmatpush2.bf16.msra.mxu0 0
    %1984 = vmatprep.subr.bf16.mxu0 0
    %1985 = vmatpush2.bf16.msra.mxu0 0
    %1986 = vmatprep.subr.bf16.mxu0 0
    %1987 = vmatpush2.bf16.msra.mxu0 0
    %1988 = vmatprep.mubr.bf16.mxu0 0
    %1989 = vmatmul.mubr.bf16.gmra.mxu0 %v1778
    %v1990 = vpop.f32.mrf.mxu0
    %v1991 = vadd.f32 %v1944, %v1990
    %v1992 = vpop.f32.mrf.mxu0
    %v1993 = vadd.f32 %v1948, %v1992
    %v1994 = vpop.f32.mrf.mxu0
    %v1995 = vpop.f32.mrf.mxu0
    %1996 = vdwg.mxu0
    %1997 = vmatprep.subr.bf16.mxu0 0
    %1998 = vmatpush1.bf16.msra.mxu0 %v1915
    %1999 = vmatprep.subr.bf16.mxu0 0
    %2000 = vmatpush1.bf16.msra.mxu0 %v1912
    %2001 = vmatprep.subr.bf16.mxu0 0
    %2002 = vmatpush1.bf16.msra.mxu0 %v1909
    %2003 = vmatprep.subr.bf16.mxu0 0
    %2004 = vmatpush1.bf16.msra.mxu0 %v1906
    %2005 = vmatprep.subr.bf16.mxu0 0
    %2006 = vmatpush1.bf16.msra.mxu0 %v1903
    %2007 = vmatprep.subr.bf16.mxu0 0
    %2008 = vmatpush1.bf16.msra.mxu0 %v1900
    %2009 = vmatprep.subr.bf16.mxu0 0
    %2010 = vmatpush1.bf16.msra.mxu0 %v1897
    %2011 = vmatprep.subr.bf16.mxu0 0
    %2012 = vmatpush1.bf16.msra.mxu0 %v1894
    %2013 = vmatprep.subr.bf16.mxu0 0
    %2014 = vmatpush2.bf16.msra.mxu0 0
    %2015 = vmatprep.subr.bf16.mxu0 0
    %2016 = vmatpush2.bf16.msra.mxu0 0
    %2017 = vmatprep.subr.bf16.mxu0 0
    %2018 = vmatpush2.bf16.msra.mxu0 0
    %2019 = vmatprep.subr.bf16.mxu0 0
    %2020 = vmatpush2.bf16.msra.mxu0 0
    %2021 = vmatprep.subr.bf16.mxu0 0
    %2022 = vmatpush2.bf16.msra.mxu0 0
    %2023 = vmatprep.subr.bf16.mxu0 0
    %2024 = vmatpush2.bf16.msra.mxu0 0
    %2025 = vmatprep.subr.bf16.mxu0 0
    %2026 = vmatpush2.bf16.msra.mxu0 0
    %2027 = vmatprep.subr.bf16.mxu0 0
    %2028 = vmatpush2.bf16.msra.mxu0 0
    %2029 = vmatprep.mubr.bf16.mxu0 0
    %2030 = vmatmul.mubr.bf16.gmra.mxu0 %v1778
    %v2031 = vpop.f32.mrf.mxu0
    %v2032 = vadd.f32 %v1952, %v2031
    %v2033 = vpop.f32.mrf.mxu0
    %v2034 = vpop.f32.mrf.mxu0
    %v2035 = vpop.f32.mrf.mxu0
    %2036 = vdwg.mxu0
    %v2037 = vadd.f32 %v1777, %v1991
    %v2038 = vmul.f32 %v2037, 0.5
    %v2039 = vtanh.pop %v2038
    %v2040 = vadd.f32 %v2039, 1.0
    %v2041 = vmul.f32 %v2040, 0.5
    %v2043 = vrot.slane %v1777, 1
    %v2045 = vadd.f32 %v2043, %v1993
    %v2046 = vmul.f32 %v2045, 0.5
    %v2047 = vtanh.pop %v2046
    %v2048 = vadd.f32 %v2047, 1.0
    %v2049 = vmul.f32 %v2048, 0.5
    %v2050 = vmul.f32 %v2041, %v2032
    %v2051 = vrot.slane %v1777, 2
    %v2053 = vadd.f32 %v2051, %v2050
    %v2054 = vtanh.pop %v2053
    %v2055 = vsub.f32 1.0, %v2049
    %v2056 = vmul.f32 %v2055, %v2054
    %v2057 = vmul.f32 %v2049, %v1771
    %v2058 = vadd.f32 %v2056, %v2057
    %s2059 = scalar_lea.vmem [#allocation9], 6
    %2060 = vst [vmem:[%s2059] sm:$0x1] %v2058
    %s2061 = sld [smem:[#allocation3 + $0x7]]
    %s2062 = smul.u32 %s2061, 3
    %s2063 = scalar_lea.vmem [#allocation4], %s2062
    %v2064 = vld [vmem:[%s2063] sm:$0x7]
    %v2065 = vpack.c.bf16 %v2058, %v2058
    %v2066 = vld [vmem:[#allocation7 + $0xc] sm:$0xff]
    %v2067 = vld [vmem:[#allocation7 + $0x14] sm:$0xf]
    %v2068 = vld [vmem:[#allocation7 + $0x24] sm:$0xff]
    %v2069 = vld [vmem:[#allocation7 + $0x2c] sm:$0xf]
    %v2070 = vld [vmem:[#allocation7 + $0x3c] sm:$0xff]
    %v2071 = vld [vmem:[#allocation7 + $0x44] sm:$0xf]
    %v2072 = vld [vmem:[#allocation7 + $0x54] sm:$0xff]
    %v2073 = vld [vmem:[#allocation7 + $0x5c] sm:$0xf]
    %v2074 = vld [vmem:[#allocation7 + $0x6c] sm:$0xff]
    %v2075 = vld [vmem:[#allocation7 + $0x74] sm:$0xf]
    %v2076 = vld [vmem:[#allocation7 + $0x84] sm:$0xff]
    %v2077 = vld [vmem:[#allocation7 + $0x8c] sm:$0xf]
    %v2078 = vld [vmem:[#allocation7 + $0x9c] sm:$0xff]
    %v2079 = vld [vmem:[#allocation7 + $0xa4] sm:$0xf]
    %v2080 = vld [vmem:[#allocation7 + $0xb4] sm:$0xff]
    %v2081 = vld [vmem:[#allocation7 + $0xbc] sm:$0xf]
    %v2082 = vld [vmem:[#allocation7 + $0xcc] sm:$0xff]
    %v2083 = vld [vmem:[#allocation7 + $0xd4] sm:$0xf]
    %v2084 = vld [vmem:[#allocation7 + $0xe4] sm:$0xff]
    %v2085 = vld [vmem:[#allocation7 + $0xec] sm:$0xf]
    %v2086 = vld [vmem:[#allocation7 + $0xfc] sm:$0xff]
    %v2087 = vld [vmem:[#allocation7 + $0x104] sm:$0xf]
    %v2088 = vld [vmem:[#allocation7 + $0x114] sm:$0xff]
    %v2089 = vld [vmem:[#allocation7 + $0x11c] sm:$0xf]
    %v2090 = vld [vmem:[#allocation7 + $0x12c] sm:$0xff]
    %v2091 = vld [vmem:[#allocation7 + $0x134] sm:$0xf]
    %v2092 = vld [vmem:[#allocation7 + $0x144] sm:$0xff]
    %v2093 = vld [vmem:[#allocation7 + $0x14c] sm:$0xf]
    %v2094 = vld [vmem:[#allocation7 + $0x15c] sm:$0xff]
    %v2095 = vld [vmem:[#allocation7 + $0x164] sm:$0xf]
    %v2096 = vld [vmem:[#allocation7 + $0x174] sm:$0xff]
    %v2097 = vld [vmem:[#allocation7 + $0x17c] sm:$0xf]
    %v2098 = vld [vmem:[%s4 + $0x3] sm:$0x7]
    %v2131 = vunpack.c.l.b16 %v2066
    %v2132 = vunpack.c.h.b16 %v2066
    %v2133 = vunpack.c.l.b16 %v2067
    %v2134 = vunpack.c.l.b16 %v2068
    %v2135 = vunpack.c.h.b16 %v2068
    %v2136 = vunpack.c.l.b16 %v2069
    %v2137 = vunpack.c.l.b16 %v2070
    %v2138 = vunpack.c.h.b16 %v2070
    %v2139 = vunpack.c.l.b16 %v2071
    %v2140 = vunpack.c.l.b16 %v2072
    %v2141 = vunpack.c.h.b16 %v2072
    %v2142 = vunpack.c.l.b16 %v2073
    %v2143 = vunpack.c.l.b16 %v2074
    %v2144 = vunpack.c.h.b16 %v2074
    %v2145 = vunpack.c.l.b16 %v2075
    %v2146 = vunpack.c.l.b16 %v2076
    %v2147 = vunpack.c.h.b16 %v2076
    %v2148 = vunpack.c.l.b16 %v2077
    %v2149 = vunpack.c.l.b16 %v2078
    %v2150 = vunpack.c.h.b16 %v2078
    %v2151 = vunpack.c.l.b16 %v2079
    %v2152 = vunpack.c.l.b16 %v2080
    %v2153 = vunpack.c.h.b16 %v2080
    %v2154 = vunpack.c.l.b16 %v2081
    %v2155 = vunpack.c.l.b16 %v2082
    %v2156 = vunpack.c.h.b16 %v2082
    %v2157 = vunpack.c.l.b16 %v2083
    %v2158 = vunpack.c.l.b16 %v2084
    %v2159 = vunpack.c.h.b16 %v2084
    %v2160 = vunpack.c.l.b16 %v2085
    %v2161 = vunpack.c.l.b16 %v2086
    %v2162 = vunpack.c.h.b16 %v2086
    %v2163 = vunpack.c.l.b16 %v2087
    %v2164 = vunpack.c.l.b16 %v2088
    %v2165 = vunpack.c.h.b16 %v2088
    %v2166 = vunpack.c.l.b16 %v2089
    %v2167 = vunpack.c.l.b16 %v2090
    %v2168 = vunpack.c.h.b16 %v2090
    %v2169 = vunpack.c.l.b16 %v2091
    %v2170 = vunpack.c.l.b16 %v2092
    %v2171 = vunpack.c.h.b16 %v2092
    %v2172 = vunpack.c.l.b16 %v2093
    %v2173 = vunpack.c.l.b16 %v2094
    %v2174 = vunpack.c.h.b16 %v2094
    %v2175 = vunpack.c.l.b16 %v2095
    %v2176 = vunpack.c.l.b16 %v2096
    %v2177 = vunpack.c.h.b16 %v2096
    %v2178 = vunpack.c.l.b16 %v2097
    %v2179 = vpack.c.b16 %v2134, %v2131
    %v2180 = vpack.c.b16 %v2135, %v2132
    %v2181 = vpack.c.b16 %v2136, %v2133
    %v2182 = vpack.c.b16 %v2140, %v2137
    %v2183 = vpack.c.b16 %v2141, %v2138
    %v2184 = vpack.c.b16 %v2142, %v2139
    %v2185 = vpack.c.b16 %v2146, %v2143
    %v2186 = vpack.c.b16 %v2147, %v2144
    %v2187 = vpack.c.b16 %v2148, %v2145
    %v2188 = vpack.c.b16 %v2152, %v2149
    %v2189 = vpack.c.b16 %v2153, %v2150
    %v2190 = vpack.c.b16 %v2154, %v2151
    %v2191 = vpack.c.b16 %v2158, %v2155
    %v2192 = vpack.c.b16 %v2159, %v2156
    %v2193 = vpack.c.b16 %v2160, %v2157
    %v2194 = vpack.c.b16 %v2164, %v2161
    %v2195 = vpack.c.b16 %v2165, %v2162
    %v2196 = vpack.c.b16 %v2166, %v2163
    %v2197 = vpack.c.b16 %v2170, %v2167
    %v2198 = vpack.c.b16 %v2171, %v2168
    %v2199 = vpack.c.b16 %v2172, %v2169
    %v2200 = vpack.c.b16 %v2176, %v2173
    %v2201 = vpack.c.b16 %v2177, %v2174
    %v2202 = vpack.c.b16 %v2178, %v2175
    %v2228 = vlaneseq
    %v2229 = vshrl.u32 %v2228, 7
    %v2230 = vsub.s32 0, %v2229
    %v2231 = vrot.slane %v2098, %v2230
    %v2232 = vlaneseq
    %v2233 = vshrl.u32 %v2232, 7
    %v2234 = vsub.s32 1, %v2233
    %v2235 = vrot.slane %v2098, %v2234
    %v2236 = vlaneseq
    %v2237 = vshrl.u32 %v2236, 7
    %v2238 = vsub.s32 2, %v2237
    %v2239 = vrot.slane %v2098, %v2238
    %2243 = vmatprep.subr.bf16.mxu0 %v2201
    %2244 = vmatpush1.bf16.msra.mxu0 %v2200
    %2245 = vmatprep.subr.bf16.mxu0 %v2198
    %2246 = vmatpush1.bf16.msra.mxu0 %v2197
    %2247 = vmatprep.subr.bf16.mxu0 %v2195
    %2248 = vmatpush1.bf16.msra.mxu0 %v2194
    %2249 = vmatprep.subr.bf16.mxu0 %v2192
    %2250 = vmatpush1.bf16.msra.mxu0 %v2191
    %2251 = vmatprep.subr.bf16.mxu0 %v2189
    %2252 = vmatpush1.bf16.msra.mxu0 %v2188
    %2253 = vmatprep.subr.bf16.mxu0 %v2186
    %2254 = vmatpush1.bf16.msra.mxu0 %v2185
    %2255 = vmatprep.subr.bf16.mxu0 %v2183
    %2256 = vmatpush1.bf16.msra.mxu0 %v2182
    %2257 = vmatprep.subr.bf16.mxu0 %v2180
    %2258 = vmatpush1.bf16.msra.mxu0 %v2179
    %2259 = vmatprep.subr.bf16.mxu0 0
    %2260 = vmatpush2.bf16.msra.mxu0 0
    %2261 = vmatprep.subr.bf16.mxu0 0
    %2262 = vmatpush2.bf16.msra.mxu0 0
    %2263 = vmatprep.subr.bf16.mxu0 0
    %2264 = vmatpush2.bf16.msra.mxu0 0
    %2265 = vmatprep.subr.bf16.mxu0 0
    %2266 = vmatpush2.bf16.msra.mxu0 0
    %2267 = vmatprep.subr.bf16.mxu0 0
    %2268 = vmatpush2.bf16.msra.mxu0 0
    %2269 = vmatprep.subr.bf16.mxu0 0
    %2270 = vmatpush2.bf16.msra.mxu0 0
    %2271 = vmatprep.subr.bf16.mxu0 0
    %2272 = vmatpush2.bf16.msra.mxu0 0
    %2273 = vmatprep.subr.bf16.mxu0 0
    %2274 = vmatpush2.bf16.msra.mxu0 0
    %2275 = vmatprep.mubr.bf16.mxu0 0
    %2276 = vmatmul.mubr.bf16.gmra.mxu0 %v2065
    %v2277 = vpop.f32.mrf.mxu0
    %v2278 = vadd.f32 %v2231, %v2277
    %v2279 = vpop.f32.mrf.mxu0
    %v2280 = vadd.f32 %v2235, %v2279
    %v2281 = vpop.f32.mrf.mxu0
    %v2282 = vpop.f32.mrf.mxu0
    %2283 = vdwg.mxu0
    %2284 = vmatprep.subr.bf16.mxu0 0
    %2285 = vmatpush1.bf16.msra.mxu0 %v2202
    %2286 = vmatprep.subr.bf16.mxu0 0
    %2287 = vmatpush1.bf16.msra.mxu0 %v2199
    %2288 = vmatprep.subr.bf16.mxu0 0
    %2289 = vmatpush1.bf16.msra.mxu0 %v2196
    %2290 = vmatprep.subr.bf16.mxu0 0
    %2291 = vmatpush1.bf16.msra.mxu0 %v2193
    %2292 = vmatprep.subr.bf16.mxu0 0
    %2293 = vmatpush1.bf16.msra.mxu0 %v2190
    %2294 = vmatprep.subr.bf16.mxu0 0
    %2295 = vmatpush1.bf16.msra.mxu0 %v2187
    %2296 = vmatprep.subr.bf16.mxu0 0
    %2297 = vmatpush1.bf16.msra.mxu0 %v2184
    %2298 = vmatprep.subr.bf16.mxu0 0
    %2299 = vmatpush1.bf16.msra.mxu0 %v2181
    %2300 = vmatprep.subr.bf16.mxu0 0
    %2301 = vmatpush2.bf16.msra.mxu0 0
    %2302 = vmatprep.subr.bf16.mxu0 0
    %2303 = vmatpush2.bf16.msra.mxu0 0
    %2304 = vmatprep.subr.bf16.mxu0 0
    %2305 = vmatpush2.bf16.msra.mxu0 0
    %2306 = vmatprep.subr.bf16.mxu0 0
    %2307 = vmatpush2.bf16.msra.mxu0 0
    %2308 = vmatprep.subr.bf16.mxu0 0
    %2309 = vmatpush2.bf16.msra.mxu0 0
    %2310 = vmatprep.subr.bf16.mxu0 0
    %2311 = vmatpush2.bf16.msra.mxu0 0
    %2312 = vmatprep.subr.bf16.mxu0 0
    %2313 = vmatpush2.bf16.msra.mxu0 0
    %2314 = vmatprep.subr.bf16.mxu0 0
    %2315 = vmatpush2.bf16.msra.mxu0 0
    %2316 = vmatprep.mubr.bf16.mxu0 0
    %2317 = vmatmul.mubr.bf16.gmra.mxu0 %v2065
    %v2318 = vpop.f32.mrf.mxu0
    %v2319 = vadd.f32 %v2239, %v2318
    %v2320 = vpop.f32.mrf.mxu0
    %v2321 = vpop.f32.mrf.mxu0
    %v2322 = vpop.f32.mrf.mxu0
    %2323 = vdwg.mxu0
    %v2324 = vadd.f32 %v2064, %v2278
    %v2325 = vmul.f32 %v2324, 0.5
    %v2326 = vtanh.pop %v2325
    %v2327 = vadd.f32 %v2326, 1.0
    %v2328 = vmul.f32 %v2327, 0.5
    %v2330 = vrot.slane %v2064, 1
    %v2332 = vadd.f32 %v2330, %v2280
    %v2333 = vmul.f32 %v2332, 0.5
    %v2334 = vtanh.pop %v2333
    %v2335 = vadd.f32 %v2334, 1.0
    %v2336 = vmul.f32 %v2335, 0.5
    %v2337 = vmul.f32 %v2328, %v2319
    %v2338 = vrot.slane %v2064, 2
    %v2340 = vadd.f32 %v2338, %v2337
    %v2341 = vtanh.pop %v2340
    %v2342 = vsub.f32 1.0, %v2336
    %v2343 = vmul.f32 %v2342, %v2341
    %v2344 = vmul.f32 %v2336, %v2058
    %v2345 = vadd.f32 %v2343, %v2344
    %s2346 = scalar_lea.vmem [#allocation9], 7
    %2347 = vst [vmem:[%s2346] sm:$0x1] %v2345
    // Predicated region
    $region26: #{tpu_custom_call.1} parent=1 // pred_check
      _
    $region27: #{tpu_custom_call.1} parent=1 // pred_check_branch
      %2349 = sbr.rel (0) target = $region29
    $region28: #{tpu_custom_call.1} parent=1 // pred_region
      %s2351 = ssub.s32 128, 128
      %2352 = vsyncadd [#allocation6], %s2351
      %s2353 = sshll.u32 [#allocation9], 4
      %s2354 = int_to_ptr.vmem [resolvable:$true] %s2353
      %2359 = dma.vmem_to_hbm [thread:$0]  %s2354, 128, %s5, [#allocation6], 16, 16, 1
    $region29: #{tpu_custom_call.1} parent=1 // pred_fallthru
      _
    // Predicated region
    $region30: #{tpu_custom_call.1} parent=1 // pred_check
      _
    $region31: #{tpu_custom_call.1} parent=1 // pred_check_branch
      %2361 = sbr.rel (0) target = $region33
    $region32: #{tpu_custom_call.1} parent=1 // pred_region
      %2362 = dma.done [#allocation6], 128
    $region33: #{tpu_custom_call.1} parent=1 // pred_fallthru
      _
    %2363 = vsyncpa [#allocation5], 1
    %2364 = vsyncpa [#allocation8], 1
    %2365 = vsyncpa [#allocation6], 1

</llo_original>
